<compile_context>
chip_gen: v5e
topology: v5e:2x2
jax: 0.10.0
libtpu: 0.0.40
codegen_flags: <defaults>
</compile_context>

<pallas_src>
import functools

import jax
import jax.numpy as jnp
from jax import lax
from jax.experimental import pallas as pl
from jax.experimental.pallas import tpu as pltpu


# -----------------------------------------------------------------------------
# Pallas kernel: one group of `bt` batch elements per grid step.
#   x_ref   : (bt*Np, Cin) bf16  -- pre-padded, flattened ReLU(BN1(x)) rows
#   w9_ref  : (9, Cin, Cin) bf16 -- 3x3 conv weights with BN2 scale folded in
#   b1_ref  : (1, Cin) f32       -- conv bias folded with BN2
#   wht_ref : (NH, Cin) bf16     -- fused (coarse+fine) head weight, transposed
#   bh_ref  : (NH, 1) f32        -- fused head bias
#   out_ref : (1, NH, L) f32     -- lane-dense, channels-major head output
# -----------------------------------------------------------------------------
def _unet_head_kernel(x_ref, w9_ref, b1_ref, wht_ref, bh_ref, out_ref, *, wp):
    L = out_ref.shape[2]

    # 3x3 conv as 9 "wide tap" matmuls over contiguous row slabs (bf16 MXU,
    # f32 accumulation).  Junk rows (pad columns) are computed and discarded.
    # On v7x the unrolled add chain can accumulate in the MXU result buffer.
    def tap(t):
        off = (t // 3) * wp + (t % 3)                 # static Python int
        slab = x_ref[pl.ds(off, L), :]                # contiguous rows, bf16
        return jnp.dot(slab, w9_ref[t], preferred_element_type=jnp.float32)

    acc = tap(0)
    for t in range(1, 9):
        acc = acc + tap(t)

    # Conv bias (BN2-folded) + ReLU; cast to bf16 for the head matmul.
    feat = jnp.maximum(acc + b1_ref[0], 0.0).astype(jnp.bfloat16)   # (L, Cin)

    # Both classifier heads in ONE matmul, contracted in place (no feat.T):
    #   head[o, j] = sum_i wht[o, i] * feat[j, i]        -> (NH, L)
    head = lax.dot_general(wht_ref[...], feat,
                           dimension_numbers=(((1,), (1,)), ((), ())),
                           preferred_element_type=jnp.float32)
    out_ref[0] = (head + bh_ref[...]).astype(out_ref.dtype)


def _pick_block_batch(B, max_bt=8):
    """Fold several batch elements per grid step, but keep >=2 grid steps when
    possible so both v7x TensorCores get work."""
    for cand in range(min(B, max_bt), 0, -1):
        if B % cand == 0 and (B // cand >= 2 or B == cand == 1):
            return cand
    return 1


def unet_multibranch_classifier(x_nchw, params, *, block_batch=None):
    """Fused head. x_nchw: (B, Cin, H, W) float32.

    Returns dict(coarse_logit=(B, NC, H, W), fine_logit=(B, NF, H, W))."""
    B, Cin, H, W = x_nchw.shape
    NC = params["wc"].shape[1]
    NF = params["wf"].shape[1]
    NH = NC + NF

    Wp = W + 2                              # padded row width
    n_rows = (H + 2) * Wp                   # rows of the SAME-padded image
    Np = -(-n_rows // 8) * 8                # per-element rows, sublane aligned

    bt = block_batch if block_batch is not None else _pick_block_batch(B)
    assert B % bt == 0
    G = B // bt
    max_off = 2 * Wp + 2                    # largest tap offset (dy=2, dx=2)
    L = bt * Np - max_off                   # accumulator rows per grid step
    # Coverage: L >= (bt-1)*Np + (H-1)*Wp + W always holds since Np >= (H+2)*Wp.

    # Fold BN running stats into per-channel scale / bias (eval-mode BN).
    def fold_bn(gamma, beta, mean, var, eps=1e-5):
        scale = gamma / jnp.sqrt(var + eps)
        return scale, beta - mean * scale

    s1, o1 = fold_bn(*params["bn1"])
    s2, o2 = fold_bn(*params["bn2"])

    # --- BN1 + ReLU + SAME pad + flatten in the wrapper (fused by XLA) -------
    x_nhwc = jnp.transpose(x_nchw, (0, 2, 3, 1)).astype(jnp.float32)
    h = jnp.maximum(x_nhwc * s1 + o1, 0.0)                         # (B,H,W,Cin)
    h_pad = jnp.pad(h, ((0, 0), (1, 1), (1, 1), (0, 0)))           # (B,H+2,W+2,Cin)
    h_flat = h_pad.reshape(B, n_rows, Cin)
    h_flat = jnp.pad(h_flat, ((0, 0), (0, Np - n_rows), (0, 0)))   # (B,Np,Cin)
    h_flat = h_flat.reshape(B * Np, Cin).astype(jnp.bfloat16)

    # --- Fold BN2 into the conv weights/bias ----------------------------------
    w1 = params["w1"] * s2[None, None, None, :]                    # HWIO
    w9 = w1.reshape(9, Cin, Cin).astype(jnp.bfloat16)
    b1 = (params["b1"] * s2 + o2)[None, :]                         # (1, Cin) f32

    # --- Fuse both 1x1 heads into a single matmul -----------------------------
    #   coarse = feat @ wc + bc
    #   fine   = feat @ wf[:Cin] + coarse @ wf[Cin:] + bf
    #          = feat @ (wf[:Cin] + wc @ wf[Cin:]) + (bc @ wf[Cin:] + bf)
    wc, bc = params["wc"], params["bc"]
    wfx, wfc = params["wf"][:Cin], params["wf"][Cin:]
    w_head = jnp.concatenate([wc, wfx + wc @ wfc], axis=1)         # (Cin, NH)
    b_head = jnp.concatenate([bc, bc @ wfc + params["bf"]])        # (NH,)
    wh_t = w_head.T.astype(jnp.bfloat16)                           # (NH, Cin)
    bh = b_head[:, None].astype(jnp.float32)                       # (NH, 1)

    full = lambda shape: pl.BlockSpec(shape, lambda i, _s=len(shape): (0,) * _s)

    out = pl.pallas_call(
        functools.partial(_unet_head_kernel, wp=Wp),
        out_shape=jax.ShapeDtypeStruct((G, NH, L), jnp.float32),
        grid_spec=pltpu.PrefetchScalarGridSpec(
            num_scalar_prefetch=0,
            grid=(G,),
            in_specs=[
                pl.BlockSpec((bt * Np, Cin), lambda i: (i, 0)),
                full((9, Cin, Cin)),
                full((1, Cin)),
                full((NH, Cin)),
                full((NH, 1)),
            ],
            out_specs=pl.BlockSpec((1, NH, L), lambda i: (i, 0, 0)),
        ),
        compiler_params=pltpu.CompilerParams(
            dimension_semantics=("parallel",),
            # Working set per step is tiny here; for large H/W/Cin re-derive the
            # block size against v7x's 64 MiB VMEM (row-tile instead of growing bt).
            vmem_limit_bytes=32 * 1024 * 1024),
    )(h_flat, w9, b1, wh_t, bh)

    # --- Wrapper-side extraction of the valid window (all static slicing) -----
    out_p = jnp.pad(out, ((0, 0), (0, 0), (0, bt * Np - L)))       # (G, NH, bt*Np)
    out_p = out_p.reshape(G, NH, bt, Np)[:, :, :, :H * Wp]
    out_p = out_p.reshape(G, NH, bt, H, Wp)[..., :W]               # (G, NH, bt, H, W)
    out_b = jnp.transpose(out_p, (0, 2, 1, 3, 4)).reshape(B, NH, H, W)

    coarse = out_b[:, :NC]
    fine = out_b[:, NC:]
    return {"coarse_logit": coarse, "fine_logit": fine}


# -----------------------------------------------------------------------------
# Pure-JAX f32 reference (unfused math, via lax.conv) for correctness check.
# -----------------------------------------------------------------------------
def reference(x_nchw, params):
    x = jnp.transpose(x_nchw, (0, 2, 3, 1)).astype(jnp.float32)

    def fold_bn(gamma, beta, mean, var, eps=1e-5):
        scale = gamma / jnp.sqrt(var + eps)
        return scale, beta - mean * scale

    s1, o1 = fold_bn(*params["bn1"])
    s2, o2 = fold_bn(*params["bn2"])

    h = jnp.maximum(x * s1 + o1, 0.0)
    y = lax.conv_general_dilated(
        h, params["w1"], window_strides=(1, 1), padding="SAME",
        dimension_numbers=("NHWC", "HWIO", "NHWC")) + params["b1"]
    feat = jnp.maximum(y * s2 + o2, 0.0)
    coarse = jnp.einsum("bhwc,cn->bhwn", feat, params["wc"]) + params["bc"]
    cat = jnp.concatenate([feat, coarse], axis=-1)
    fine = jnp.einsum("bhwc,cn->bhwn", cat, params["wf"]) + params["bf"]
    return {
        "coarse_logit": jnp.transpose(coarse, (0, 3, 1, 2)),
        "fine_logit": jnp.transpose(fine, (0, 3, 1, 2)),
    }


# -----------------------------------------------------------------------------
# Deterministic synthetic parameter init.
# -----------------------------------------------------------------------------
def init_params(key, Cin, NC, NF):
    ks = jax.random.split(key, 12)

    def n(k, shape, scale=0.1):
        return (scale * jax.random.normal(k, shape)).astype(jnp.float32)

    bn = lambda kg, kb, km, kv: (
        1.0 + n(kg, (Cin,)), n(kb, (Cin,)), n(km, (Cin,)),
        1.0 + jnp.abs(n(kv, (Cin,))))
    return {
        "bn1": bn(ks[0], ks[1], ks[2], ks[3]),
        "w1": n(ks[4], (3, 3, Cin, Cin)),
        "b1": n(ks[5], (Cin,)),
        "bn2": bn(ks[6], ks[7], ks[8], ks[9]),
        "wc": n(ks[10], (Cin, NC)),
        "bc": jnp.zeros((NC,), jnp.float32),
        "wf": n(ks[11], (Cin + NC, NF)),
        "bf": jnp.zeros((NF,), jnp.float32),
    }


if __name__ == "__main__":
    B, Cin, H, W = 2, 32, 16, 16
    NC, NF = 4, 8            # param.dataset.n_coarse / n_fine

    key = jax.random.PRNGKey(0)
    kx, kp = jax.random.split(key)
    x = jax.random.normal(kx, (B, Cin, H, W), dtype=jnp.float32)
    params = init_params(kp, Cin, NC, NF)

    out = jax.jit(functools.partial(unet_multibranch_classifier, params=params))(x)
    jax.block_until_ready(out)

    ref = reference(x, params)
    # Tolerance relaxed vs the pure-f32 path: the kernel runs the MXU in bf16
    # (conv taps + fused head) with f32 accumulation.
    for k in ("coarse_logit", "fine_logit"):
        assert out[k].shape == ref[k].shape, (k, out[k].shape, ref[k].shape)
        assert jnp.allclose(out[k], ref[k], rtol=2e-2, atol=2e-2), k

    print("KERNEL_OK")
</pallas_src>

<mosaic_0001>
module attributes {stable_mosaic.version = 11 : i64} {
  func.func @_unet_head_kernel(%arg0: i32, %arg1: memref<328x32xbf16, #tpu.memory_space<vmem>>, %arg2: memref<9x32x32xbf16, #tpu.memory_space<vmem>>, %arg3: memref<1x32xf32, #tpu.memory_space<vmem>>, %arg4: memref<12x32xbf16, #tpu.memory_space<vmem>>, %arg5: memref<12x1xf32, #tpu.memory_space<vmem>>, %arg6: memref<1x12x290xf32, #tpu.memory_space<vmem>>) attributes {dimension_semantics = [#tpu.dimension_semantics<parallel>], iteration_bounds = array<i64: 2>, scalar_prefetch = 0 : i64, scratch_operands = 0 : i64, tpu.core_type = #tpu.core_type<tc>, window_params = [{transform_indices = @transform_0, window_bounds = array<i64: 328, 32>}, {pipeline_mode = #tpu.pipeline_mode<synchronous>, transform_indices = @transform_1, window_bounds = array<i64: 9, 32, 32>}, {pipeline_mode = #tpu.pipeline_mode<synchronous>, transform_indices = @transform_2, window_bounds = array<i64: 1, 32>}, {pipeline_mode = #tpu.pipeline_mode<synchronous>, transform_indices = @transform_3, window_bounds = array<i64: 12, 32>}, {pipeline_mode = #tpu.pipeline_mode<synchronous>, transform_indices = @transform_4, window_bounds = array<i64: 12, 1>}, {transform_indices = @transform_5, window_bounds = array<i64: 1, 12, 290>}]} {
    %c0 = arith.constant 0 : index
    %c0_0 = arith.constant 0 : index
    %0 = vector.load %arg1[%c0, %c0_0] : memref<328x32xbf16, #tpu.memory_space<vmem>>, vector<290x32xbf16>
    %c0_1 = arith.constant 0 : index
    %c0_2 = arith.constant 0 : index
    %c0_3 = arith.constant 0 : index
    %1 = vector.load %arg2[%c0_1, %c0_2, %c0_3] : memref<9x32x32xbf16, #tpu.memory_space<vmem>>, vector<1x32x32xbf16>
    %2 = vector.shape_cast %1 : vector<1x32x32xbf16> to vector<32x32xbf16>
    %cst = arith.constant dense<0.000000e+00> : vector<290x32xf32>
    %3 = tpu.matmul %0, %2, %cst {dimension_numbers = #tpu.dot_dimension_numbers<[1], [0], [0], [1], [0, 0, 1, 1], [], []>} : vector<290x32xbf16>, vector<32x32xbf16>, vector<290x32xf32> -> vector<290x32xf32>
    %c1 = arith.constant 1 : index
    %c0_4 = arith.constant 0 : index
    %4 = vector.load %arg1[%c1, %c0_4] : memref<328x32xbf16, #tpu.memory_space<vmem>>, vector<290x32xbf16>
    %c1_5 = arith.constant 1 : index
    %c0_6 = arith.constant 0 : index
    %c0_7 = arith.constant 0 : index
    %5 = vector.load %arg2[%c1_5, %c0_6, %c0_7] : memref<9x32x32xbf16, #tpu.memory_space<vmem>>, vector<1x32x32xbf16>
    %6 = vector.shape_cast %5 : vector<1x32x32xbf16> to vector<32x32xbf16>
    %cst_8 = arith.constant dense<0.000000e+00> : vector<290x32xf32>
    %7 = tpu.matmul %4, %6, %cst_8 {dimension_numbers = #tpu.dot_dimension_numbers<[1], [0], [0], [1], [0, 0, 1, 1], [], []>} : vector<290x32xbf16>, vector<32x32xbf16>, vector<290x32xf32> -> vector<290x32xf32>
    %8 = arith.addf %3, %7 : vector<290x32xf32>
    %c2 = arith.constant 2 : index
    %c0_9 = arith.constant 0 : index
    %9 = vector.load %arg1[%c2, %c0_9] : memref<328x32xbf16, #tpu.memory_space<vmem>>, vector<290x32xbf16>
    %c2_10 = arith.constant 2 : index
    %c0_11 = arith.constant 0 : index
    %c0_12 = arith.constant 0 : index
    %10 = vector.load %arg2[%c2_10, %c0_11, %c0_12] : memref<9x32x32xbf16, #tpu.memory_space<vmem>>, vector<1x32x32xbf16>
    %11 = vector.shape_cast %10 : vector<1x32x32xbf16> to vector<32x32xbf16>
    %cst_13 = arith.constant dense<0.000000e+00> : vector<290x32xf32>
    %12 = tpu.matmul %9, %11, %cst_13 {dimension_numbers = #tpu.dot_dimension_numbers<[1], [0], [0], [1], [0, 0, 1, 1], [], []>} : vector<290x32xbf16>, vector<32x32xbf16>, vector<290x32xf32> -> vector<290x32xf32>
    %13 = arith.addf %8, %12 : vector<290x32xf32>
    %c18 = arith.constant 18 : index
    %c0_14 = arith.constant 0 : index
    %14 = vector.load %arg1[%c18, %c0_14] : memref<328x32xbf16, #tpu.memory_space<vmem>>, vector<290x32xbf16>
    %c3 = arith.constant 3 : index
    %c0_15 = arith.constant 0 : index
    %c0_16 = arith.constant 0 : index
    %15 = vector.load %arg2[%c3, %c0_15, %c0_16] : memref<9x32x32xbf16, #tpu.memory_space<vmem>>, vector<1x32x32xbf16>
    %16 = vector.shape_cast %15 : vector<1x32x32xbf16> to vector<32x32xbf16>
    %cst_17 = arith.constant dense<0.000000e+00> : vector<290x32xf32>
    %17 = tpu.matmul %14, %16, %cst_17 {dimension_numbers = #tpu.dot_dimension_numbers<[1], [0], [0], [1], [0, 0, 1, 1], [], []>} : vector<290x32xbf16>, vector<32x32xbf16>, vector<290x32xf32> -> vector<290x32xf32>
    %18 = arith.addf %13, %17 : vector<290x32xf32>
    %c19 = arith.constant 19 : index
    %c0_18 = arith.constant 0 : index
    %19 = vector.load %arg1[%c19, %c0_18] : memref<328x32xbf16, #tpu.memory_space<vmem>>, vector<290x32xbf16>
    %c4 = arith.constant 4 : index
    %c0_19 = arith.constant 0 : index
    %c0_20 = arith.constant 0 : index
    %20 = vector.load %arg2[%c4, %c0_19, %c0_20] : memref<9x32x32xbf16, #tpu.memory_space<vmem>>, vector<1x32x32xbf16>
    %21 = vector.shape_cast %20 : vector<1x32x32xbf16> to vector<32x32xbf16>
    %cst_21 = arith.constant dense<0.000000e+00> : vector<290x32xf32>
    %22 = tpu.matmul %19, %21, %cst_21 {dimension_numbers = #tpu.dot_dimension_numbers<[1], [0], [0], [1], [0, 0, 1, 1], [], []>} : vector<290x32xbf16>, vector<32x32xbf16>, vector<290x32xf32> -> vector<290x32xf32>
    %23 = arith.addf %18, %22 : vector<290x32xf32>
    %c20 = arith.constant 20 : index
    %c0_22 = arith.constant 0 : index
    %24 = vector.load %arg1[%c20, %c0_22] : memref<328x32xbf16, #tpu.memory_space<vmem>>, vector<290x32xbf16>
    %c5 = arith.constant 5 : index
    %c0_23 = arith.constant 0 : index
    %c0_24 = arith.constant 0 : index
    %25 = vector.load %arg2[%c5, %c0_23, %c0_24] : memref<9x32x32xbf16, #tpu.memory_space<vmem>>, vector<1x32x32xbf16>
    %26 = vector.shape_cast %25 : vector<1x32x32xbf16> to vector<32x32xbf16>
    %cst_25 = arith.constant dense<0.000000e+00> : vector<290x32xf32>
    %27 = tpu.matmul %24, %26, %cst_25 {dimension_numbers = #tpu.dot_dimension_numbers<[1], [0], [0], [1], [0, 0, 1, 1], [], []>} : vector<290x32xbf16>, vector<32x32xbf16>, vector<290x32xf32> -> vector<290x32xf32>
    %28 = arith.addf %23, %27 : vector<290x32xf32>
    %c36 = arith.constant 36 : index
    %c0_26 = arith.constant 0 : index
    %29 = vector.load %arg1[%c36, %c0_26] : memref<328x32xbf16, #tpu.memory_space<vmem>>, vector<290x32xbf16>
    %c6 = arith.constant 6 : index
    %c0_27 = arith.constant 0 : index
    %c0_28 = arith.constant 0 : index
    %30 = vector.load %arg2[%c6, %c0_27, %c0_28] : memref<9x32x32xbf16, #tpu.memory_space<vmem>>, vector<1x32x32xbf16>
    %31 = vector.shape_cast %30 : vector<1x32x32xbf16> to vector<32x32xbf16>
    %cst_29 = arith.constant dense<0.000000e+00> : vector<290x32xf32>
    %32 = tpu.matmul %29, %31, %cst_29 {dimension_numbers = #tpu.dot_dimension_numbers<[1], [0], [0], [1], [0, 0, 1, 1], [], []>} : vector<290x32xbf16>, vector<32x32xbf16>, vector<290x32xf32> -> vector<290x32xf32>
    %33 = arith.addf %28, %32 : vector<290x32xf32>
    %c37 = arith.constant 37 : index
    %c0_30 = arith.constant 0 : index
    %34 = vector.load %arg1[%c37, %c0_30] : memref<328x32xbf16, #tpu.memory_space<vmem>>, vector<290x32xbf16>
    %c7 = arith.constant 7 : index
    %c0_31 = arith.constant 0 : index
    %c0_32 = arith.constant 0 : index
    %35 = vector.load %arg2[%c7, %c0_31, %c0_32] : memref<9x32x32xbf16, #tpu.memory_space<vmem>>, vector<1x32x32xbf16>
    %36 = vector.shape_cast %35 : vector<1x32x32xbf16> to vector<32x32xbf16>
    %cst_33 = arith.constant dense<0.000000e+00> : vector<290x32xf32>
    %37 = tpu.matmul %34, %36, %cst_33 {dimension_numbers = #tpu.dot_dimension_numbers<[1], [0], [0], [1], [0, 0, 1, 1], [], []>} : vector<290x32xbf16>, vector<32x32xbf16>, vector<290x32xf32> -> vector<290x32xf32>
    %38 = arith.addf %33, %37 : vector<290x32xf32>
    %c38 = arith.constant 38 : index
    %c0_34 = arith.constant 0 : index
    %39 = vector.load %arg1[%c38, %c0_34] : memref<328x32xbf16, #tpu.memory_space<vmem>>, vector<290x32xbf16>
    %c8 = arith.constant 8 : index
    %c0_35 = arith.constant 0 : index
    %c0_36 = arith.constant 0 : index
    %40 = vector.load %arg2[%c8, %c0_35, %c0_36] : memref<9x32x32xbf16, #tpu.memory_space<vmem>>, vector<1x32x32xbf16>
    %41 = vector.shape_cast %40 : vector<1x32x32xbf16> to vector<32x32xbf16>
    %cst_37 = arith.constant dense<0.000000e+00> : vector<290x32xf32>
    %42 = tpu.matmul %39, %41, %cst_37 {dimension_numbers = #tpu.dot_dimension_numbers<[1], [0], [0], [1], [0, 0, 1, 1], [], []>} : vector<290x32xbf16>, vector<32x32xbf16>, vector<290x32xf32> -> vector<290x32xf32>
    %43 = arith.addf %38, %42 : vector<290x32xf32>
    %c0_38 = arith.constant 0 : index
    %c0_39 = arith.constant 0 : index
    %44 = vector.load %arg3[%c0_38, %c0_39] : memref<1x32xf32, #tpu.memory_space<vmem>>, vector<1x32xf32>
    %45 = vector.shape_cast %44 : vector<1x32xf32> to vector<32xf32>
    %46 = vector.shape_cast %45 : vector<32xf32> to vector<1x32xf32>
    %47 = vector.broadcast %46 : vector<1x32xf32> to vector<290x32xf32>
    %48 = arith.addf %43, %47 : vector<290x32xf32>
    %cst_40 = arith.constant 0.000000e+00 : f32
    %49 = vector.broadcast %cst_40 : f32 to vector<290x32xf32>
    %50 = arith.maximumf %48, %49 : vector<290x32xf32>
    %51 = arith.truncf %50 : vector<290x32xf32> to vector<290x32xbf16>
    %c0_41 = arith.constant 0 : index
    %c0_42 = arith.constant 0 : index
    %52 = vector.load %arg4[%c0_41, %c0_42] : memref<12x32xbf16, #tpu.memory_space<vmem>>, vector<12x32xbf16>
    %cst_43 = arith.constant dense<0.000000e+00> : vector<12x290xf32>
    %53 = tpu.matmul %52, %51, %cst_43 {dimension_numbers = #tpu.dot_dimension_numbers<[1], [1], [0], [0], [0, 0, 1, 0], [], []>} : vector<12x32xbf16>, vector<290x32xbf16>, vector<12x290xf32> -> vector<12x290xf32>
    %c0_44 = arith.constant 0 : index
    %c0_45 = arith.constant 0 : index
    %54 = vector.load %arg5[%c0_44, %c0_45] : memref<12x1xf32, #tpu.memory_space<vmem>>, vector<12x1xf32>
    %55 = vector.broadcast %54 : vector<12x1xf32> to vector<12x290xf32>
    %56 = arith.addf %53, %55 : vector<12x290xf32>
    %c0_46 = arith.constant 0 : index
    %c0_47 = arith.constant 0 : index
    %c0_48 = arith.constant 0 : index
    %57 = vector.load %arg6[%c0_46, %c0_47, %c0_48] : memref<1x12x290xf32, #tpu.memory_space<vmem>>, vector<1x12x290xf32>
    %58 = vector.shape_cast %57 : vector<1x12x290xf32> to vector<12x290xf32>
    %59 = vector.shape_cast %56 : vector<12x290xf32> to vector<1x12x290xf32>
    tpu.vector_store %arg6[%c0_46, %c0_47, %c0_48], %59 {strides = array<i32>} : memref<1x12x290xf32, #tpu.memory_space<vmem>>, vector<1x12x290xf32>,
    return
  }
  func.func @transform_0(%arg0: i32) -> (i32, i32) {
    %c0_i32 = arith.constant 0 : i32
    %c0_i32_0 = arith.constant 0 : i32
    return %arg0, %c0_i32 : i32, i32
  }
  func.func @transform_1(%arg0: i32) -> (i32, i32, i32) {
    %c0_i32 = arith.constant 0 : i32
    %c0_i32_0 = arith.constant 0 : i32
    %c0_i32_1 = arith.constant 0 : i32
    %c0_i32_2 = arith.constant 0 : i32
    return %c0_i32, %c0_i32_0, %c0_i32_1 : i32, i32, i32
  }
  func.func @transform_2(%arg0: i32) -> (i32, i32) {
    %c0_i32 = arith.constant 0 : i32
    %c0_i32_0 = arith.constant 0 : i32
    %c0_i32_1 = arith.constant 0 : i32
    return %c0_i32, %c0_i32_0 : i32, i32
  }
  func.func @transform_3(%arg0: i32) -> (i32, i32) {
    %c0_i32 = arith.constant 0 : i32
    %c0_i32_0 = arith.constant 0 : i32
    %c0_i32_1 = arith.constant 0 : i32
    return %c0_i32, %c0_i32_0 : i32, i32
  }
  func.func @transform_4(%arg0: i32) -> (i32, i32) {
    %c0_i32 = arith.constant 0 : i32
    %c0_i32_0 = arith.constant 0 : i32
    %c0_i32_1 = arith.constant 0 : i32
    return %c0_i32, %c0_i32_0 : i32, i32
  }
  func.func @transform_5(%arg0: i32) -> (i32, i32, i32) {
    %c0_i32 = arith.constant 0 : i32
    %c0_i32_0 = arith.constant 0 : i32
    %c0_i32_1 = arith.constant 0 : i32
    return %arg0, %c0_i32, %c0_i32_0 : i32, i32, i32
  }
}

</mosaic_0001>

<llo_original>
// kernel: unet_multibranch_classifier.1
$region0: #{unet_multibranch_classifier.1}
  #allocation0 [shape = 'u32[]', space=smem, size = 0x4, offset = 0x4, fixed_abs, tag = 'smem constant byte address 0x4 - core index']
  #allocation1 [shape = 'u32[72,128]{1,0:T(1,128)}', space=vmem, size = 0x9000, scoped, tag = 'internal scratch']
  %s0 = inlined_call_operand.vmem [shape: bf16[656,32], index: 0, kind: input, shape index: {}]
  %s1 = inlined_call_operand.vmem [shape: bf16[9,32,32], index: 1, kind: input, shape index: {}]
  %s2 = inlined_call_operand.vmem [shape: f32[1,32], index: 2, kind: input, shape index: {}]
  %s3 = inlined_call_operand.vmem [shape: bf16[12,32], index: 3, kind: input, shape index: {}]
  %s4 = inlined_call_operand.vmem [shape: f32[12,1], index: 4, kind: input, shape index: {}]
  %s5 = inlined_call_operand.vmem [shape: f32[2,12,290], index: 5, kind: output, shape index: {}]
  %s6 = sld [smem:[#allocation0]]
  $region53: #{unet_multibranch_classifier.1} parent=0
    _
  %s8 = ssub.s32 1, %s6
  %s9 = scalar_select 0, %s8, %s6
  loop: start=0, step=1, limit=4
  $region2: #{unet_multibranch_classifier.1} parent=0 // loop_pre_header
    _
  $region3: #{unet_multibranch_classifier.1} parent=0 // loop_header
    %s11 = sphi 0, %s15
    %p12 = scmp.ge.s32.totalorder %s11, 4
    %s21 = sphi 0, %s23
    %s24 = sphi 0, %s21
    %s25 = sphi 0, %s24
    %s41 = sphi 0, %s25
    %s45 = sphi 0, %s45
    %s47 = sphi 0, %s45
    %s48 = sphi 0, %s47
    %s62 = sphi 0, %s48
    %s66 = sphi 0, %s66
    %s68 = sphi 0, %s66
    %s69 = sphi 0, %s68
    %s83 = sphi 0, %s69
    %s87 = sphi 0, %s87
    %s89 = sphi 0, %s87
    %s90 = sphi 0, %s89
    %s104 = sphi 0, %s90
    %s108 = sphi 0, %s108
    %s110 = sphi 0, %s108
    %s111 = sphi 0, %s110
    %s125 = sphi 0, %s111
    %s131 = sphi 0, %s133
    %s134 = sphi 0, %s131
    %s135 = sphi 0, %s134
    %s151 = sphi 0, %s135
  $region4: #{unet_multibranch_classifier.1} parent=0 // loop_header_branch
    %14 = sbr.rel (%p12) target = $region8
  $region5: #{unet_multibranch_classifier.1} parent=0 // loop_body
    %s16 = ssub.s32 %s11, 1
    %s17 = ssub.s32 %s11, 2
    %s18 = sadd.s32 %s11, 1
    %s19 = ssub.s32 %s11, %s18
    %p20 = scmp.eq.s32.totalorder %s19, 0
    %s22 = sadd.s32 %s21, 1
    %s23 = scalar_select %p20, %s21, %s22
    %p26 = pneg %p20
    %p27 = scmp.eq.s32.totalorder %s11, 1
    %p28 = por %p26, %p27
    %p29 = scmp.ne.s32.totalorder %s21, %s24
    %p30 = scmp.eq.s32.totalorder %s11, 0
    %p31 = por %p29, %p30
    %p32 = scmp.ne.s32.totalorder %s21, %s24
    %p33 = scmp.eq.s32.totalorder %s16, 1
    %p34 = por %p32, %p33
    %p35 = scmp.ne.s32.totalorder %s24, %s25
    %p36 = scmp.eq.s32.totalorder %s16, 0
    %p37 = por %p35, %p36
    %p38 = scmp.ne.s32.totalorder %s24, %s25
    %p39 = scmp.eq.s32.totalorder %s17, 1
    %p40 = por %p38, %p39
    %p42 = scmp.ne.s32.totalorder %s25, %s41
    %p43 = scmp.eq.s32.totalorder %s17, 0
    %p44 = por %p42, %p43
    %s46 = sadd.s32 %s45, 1
    %p49 = scmp.eq.s32.totalorder %s11, 1
    %p50 = scmp.ne.s32.totalorder %s45, %s47
    %p51 = scmp.eq.s32.totalorder %s11, 0
    %p52 = por %p50, %p51
    %p53 = scmp.ne.s32.totalorder %s45, %s47
    %p54 = scmp.eq.s32.totalorder %s16, 1
    %p55 = por %p53, %p54
    %p56 = scmp.ne.s32.totalorder %s47, %s48
    %p57 = scmp.eq.s32.totalorder %s16, 0
    %p58 = por %p56, %p57
    %p59 = scmp.ne.s32.totalorder %s47, %s48
    %p60 = scmp.eq.s32.totalorder %s17, 1
    %p61 = por %p59, %p60
    %p63 = scmp.ne.s32.totalorder %s48, %s62
    %p64 = scmp.eq.s32.totalorder %s17, 0
    %p65 = por %p63, %p64
    %s67 = sadd.s32 %s66, 1
    %p70 = scmp.eq.s32.totalorder %s11, 1
    %p71 = scmp.ne.s32.totalorder %s66, %s68
    %p72 = scmp.eq.s32.totalorder %s11, 0
    %p73 = por %p71, %p72
    %p74 = scmp.ne.s32.totalorder %s66, %s68
    %p75 = scmp.eq.s32.totalorder %s16, 1
    %p76 = por %p74, %p75
    %p77 = scmp.ne.s32.totalorder %s68, %s69
    %p78 = scmp.eq.s32.totalorder %s16, 0
    %p79 = por %p77, %p78
    %p80 = scmp.ne.s32.totalorder %s68, %s69
    %p81 = scmp.eq.s32.totalorder %s17, 1
    %p82 = por %p80, %p81
    %p84 = scmp.ne.s32.totalorder %s69, %s83
    %p85 = scmp.eq.s32.totalorder %s17, 0
    %p86 = por %p84, %p85
    %s88 = sadd.s32 %s87, 1
    %p91 = scmp.eq.s32.totalorder %s11, 1
    %p92 = scmp.ne.s32.totalorder %s87, %s89
    %p93 = scmp.eq.s32.totalorder %s11, 0
    %p94 = por %p92, %p93
    %p95 = scmp.ne.s32.totalorder %s87, %s89
    %p96 = scmp.eq.s32.totalorder %s16, 1
    %p97 = por %p95, %p96
    %p98 = scmp.ne.s32.totalorder %s89, %s90
    %p99 = scmp.eq.s32.totalorder %s16, 0
    %p100 = por %p98, %p99
    %p101 = scmp.ne.s32.totalorder %s89, %s90
    %p102 = scmp.eq.s32.totalorder %s17, 1
    %p103 = por %p101, %p102
    %p105 = scmp.ne.s32.totalorder %s90, %s104
    %p106 = scmp.eq.s32.totalorder %s17, 0
    %p107 = por %p105, %p106
    %s109 = sadd.s32 %s108, 1
    %p112 = scmp.eq.s32.totalorder %s11, 1
    %p113 = scmp.ne.s32.totalorder %s108, %s110
    %p114 = scmp.eq.s32.totalorder %s11, 0
    %p115 = por %p113, %p114
    %p116 = scmp.ne.s32.totalorder %s108, %s110
    %p117 = scmp.eq.s32.totalorder %s16, 1
    %p118 = por %p116, %p117
    %p119 = scmp.ne.s32.totalorder %s110, %s111
    %p120 = scmp.eq.s32.totalorder %s16, 0
    %p121 = por %p119, %p120
    %p122 = scmp.ne.s32.totalorder %s110, %s111
    %p123 = scmp.eq.s32.totalorder %s17, 1
    %p124 = por %p122, %p123
    %p126 = scmp.ne.s32.totalorder %s111, %s125
    %p127 = scmp.eq.s32.totalorder %s17, 0
    %p128 = por %p126, %p127
    %s129 = ssub.s32 %s11, %s18
    %p130 = scmp.eq.s32.totalorder %s129, 0
    %s132 = sadd.s32 %s131, 1
    %s133 = scalar_select %p130, %s131, %s132
    %p136 = pneg %p130
    %p137 = scmp.eq.s32.totalorder %s11, 1
    %p138 = por %p136, %p137
    %p139 = scmp.ne.s32.totalorder %s131, %s134
    %p140 = scmp.eq.s32.totalorder %s11, 0
    %p141 = por %p139, %p140
    %p142 = scmp.ne.s32.totalorder %s131, %s134
    %p143 = scmp.eq.s32.totalorder %s16, 1
    %p144 = por %p142, %p143
    %p145 = scmp.ne.s32.totalorder %s134, %s135
    %p146 = scmp.eq.s32.totalorder %s16, 0
    %p147 = por %p145, %p146
    %p148 = scmp.ne.s32.totalorder %s134, %s135
    %p149 = scmp.eq.s32.totalorder %s17, 1
    %p150 = por %p148, %p149
    %p152 = scmp.ne.s32.totalorder %s135, %s151
    %p153 = scmp.eq.s32.totalorder %s17, 0
    %p154 = por %p152, %p153
    %p155 = scmp.le.s32.totalorder 1, %s11
    %p156 = scmp.lt.s32.totalorder %s11, 3
    %p157 = pnand %p155, %p156
    %p158 = pneg %p157
    // Predicated region
    $region9: #{unet_multibranch_classifier.1} parent=5 // pred_check
      _
    $region10: #{unet_multibranch_classifier.1} parent=5 // pred_check_branch
      %160 = sbr.rel (%p157) target = $region12
    $region11: #{unet_multibranch_classifier.1} parent=5 // pred_region
      %s161 = ssub.s32 %s11, 1
      // Predicated region
      $region13: #{unet_multibranch_classifier.1} parent=11 // pred_check
        %p162 = pneg %p58
      $region14: #{unet_multibranch_classifier.1} parent=11 // pred_check_branch
        %164 = sbr.rel (%p162) target = $region16
      $region15: #{unet_multibranch_classifier.1} parent=11 // pred_region
        _
      $region16: #{unet_multibranch_classifier.1} parent=11 // pred_fallthru
        _
      // Predicated region
      $region17: #{unet_multibranch_classifier.1} parent=11 // pred_check
        %p165 = pneg %p79
      $region18: #{unet_multibranch_classifier.1} parent=11 // pred_check_branch
        %167 = sbr.rel (%p165) target = $region20
      $region19: #{unet_multibranch_classifier.1} parent=11 // pred_region
        _
      $region20: #{unet_multibranch_classifier.1} parent=11 // pred_fallthru
        _
      // Predicated region
      $region21: #{unet_multibranch_classifier.1} parent=11 // pred_check
        %p168 = pneg %p100
      $region22: #{unet_multibranch_classifier.1} parent=11 // pred_check_branch
        %170 = sbr.rel (%p168) target = $region24
      $region23: #{unet_multibranch_classifier.1} parent=11 // pred_region
        _
      $region24: #{unet_multibranch_classifier.1} parent=11 // pred_fallthru
        _
      // Predicated region
      $region25: #{unet_multibranch_classifier.1} parent=11 // pred_check
        %p171 = pneg %p121
      $region26: #{unet_multibranch_classifier.1} parent=11 // pred_check_branch
        %173 = sbr.rel (%p171) target = $region28
      $region27: #{unet_multibranch_classifier.1} parent=11 // pred_region
        _
      $region28: #{unet_multibranch_classifier.1} parent=11 // pred_fallthru
        _
    $region12: #{unet_multibranch_classifier.1} parent=5 // pred_fallthru
      _
    %p174 = scmp.lt.s32.totalorder %s11, 2
    // Predicated region
    $region29: #{unet_multibranch_classifier.1} parent=5 // pred_check
      %p175 = pneg %p174
    $region30: #{unet_multibranch_classifier.1} parent=5 // pred_check_branch
      %177 = sbr.rel (%p175) target = $region32
    $region31: #{unet_multibranch_classifier.1} parent=5 // pred_region
      // Predicated region
      $region33: #{unet_multibranch_classifier.1} parent=31 // pred_check
        %p178 = pneg %p31
      $region34: #{unet_multibranch_classifier.1} parent=31 // pred_check_branch
        %180 = sbr.rel (%p178) target = $region36
      $region35: #{unet_multibranch_classifier.1} parent=31 // pred_region
        %s181 = smul.u32 41, %s11
        %p182 = scmp.lt.s32.totalorder %s181, 81
        %s183 = scalar_select %p182, %s181, 81
        %s184 = smul.addr %s183, 4
        %s185 = scalar_lea.vmem %s0, %s184
        %s186 = smul.u32 41, %s11
      $region36: #{unet_multibranch_classifier.1} parent=31 // pred_fallthru
        _
    $region32: #{unet_multibranch_classifier.1} parent=5 // pred_fallthru
      _
    %p187 = scmp.le.s32.totalorder 1, %s11
    %p188 = scmp.lt.s32.totalorder %s11, 3
    %p189 = pnand %p187, %p188
    %p190 = pneg %p189
    // Predicated region
    $region37: #{unet_multibranch_classifier.1} parent=5 // pred_check
      _
    $region38: #{unet_multibranch_classifier.1} parent=5 // pred_check_branch
      %192 = sbr.rel (%p189) target = $region40
    $region39: #{unet_multibranch_classifier.1} parent=5 // pred_region
      %s193 = ssub.s32 %s11, 1
      %s194 = smul.u32 41, %s16
      %p195 = scmp.lt.s32.totalorder %s194, 81
      %s196 = scalar_select %p195, %s194, 81
      %s197 = smul.addr %s196, 4
      %s198 = scalar_lea.vmem %s0, %s197
      %p199 = pneg %p37
      %p200 = pneg %p34
      %p201 = pneg %p58
      %p202 = pneg %p55
      %p203 = pneg %p79
      %p204 = pneg %p76
      %p205 = pneg %p100
      %p206 = pneg %p97
      %p207 = pneg %p121
      %p208 = pneg %p118
      %p209 = pneg %p147
      %p210 = pneg %p144
      %p211 = scmp.lt.s32.totalorder %s16, 1
      %s212 = scalar_select %p211, %s16, 1
      %s213 = smul.addr %s212, 6
      %s214 = smul.addr %s213, 8
      %s215 = scalar_lea.vmem %s5, %s214
      %s216 = smul.u32 41, %s16
      %p217 = scmp.lt.s32.totalorder %s216, 81
      %s218 = scalar_select %p217, %s216, 81
      %s219 = smul.addr %s218, 4
      %s220 = scalar_lea.vmem %s0, %s219
      %s221 = smul.u32 41, %s16
      %p222 = scmp.lt.s32.totalorder %s16, 1
      %s223 = scalar_select %p222, %s16, 1
      %s224 = smul.addr %s223, 6
      %s225 = smul.addr %s224, 8
      %s226 = scalar_lea.vmem %s5, %s225
      %v228 = vld [vmem:[%s220] sm:$0xf]
      %v229 = vld [vmem:[%s220 + $0x4] sm:$0xf]
      %v230 = vld [vmem:[%s220 + $0x8] sm:$0xf]
      %v231 = vld [vmem:[%s220 + $0xc] sm:$0xf]
      %v232 = vld [vmem:[%s220 + $0x10] sm:$0xf]
      %v233 = vld [vmem:[%s220 + $0x14] sm:$0xf]
      %v234 = vld [vmem:[%s220 + $0x18] sm:$0xf]
      %v235 = vld [vmem:[%s220 + $0x1c] sm:$0xf]
      %v236 = vld [vmem:[%s220 + $0x20] sm:$0xf]
      %v237 = vld [vmem:[%s220 + $0x24] sm:$0xf]
      %v238 = vld [vmem:[%s220 + $0x28] sm:$0xf]
      %v239 = vld [vmem:[%s220 + $0x2c] sm:$0xf]
      %v240 = vld [vmem:[%s220 + $0x30] sm:$0xf]
      %v241 = vld [vmem:[%s220 + $0x34] sm:$0xf]
      %v242 = vld [vmem:[%s220 + $0x38] sm:$0xf]
      %v243 = vld [vmem:[%s220 + $0x3c] sm:$0xf]
      %v244 = vld [vmem:[%s220 + $0x40] sm:$0xf]
      %v245 = vld [vmem:[%s220 + $0x44] sm:$0xf]
      %v246 = vld [vmem:[%s220 + $0x48] sm:$0xf]
      %v247 = vld [vmem:[%s220 + $0x4c] sm:$0xf]
      %v248 = vld [vmem:[%s220 + $0x50] sm:$0xf]
      %v249 = vld [vmem:[%s220 + $0x54] sm:$0xf]
      %v250 = vld [vmem:[%s220 + $0x58] sm:$0xf]
      %v251 = vld [vmem:[%s220 + $0x5c] sm:$0xf]
      %v252 = vld [vmem:[%s220 + $0x60] sm:$0xf]
      %v253 = vld [vmem:[%s220 + $0x64] sm:$0xf]
      %v254 = vld [vmem:[%s220 + $0x68] sm:$0xf]
      %v255 = vld [vmem:[%s220 + $0x6c] sm:$0xf]
      %v256 = vld [vmem:[%s220 + $0x70] sm:$0xf]
      %v257 = vld [vmem:[%s220 + $0x74] sm:$0xf]
      %v258 = vld [vmem:[%s220 + $0x78] sm:$0xf]
      %v259 = vld [vmem:[%s220 + $0x7c] sm:$0xf]
      %v260 = vld [vmem:[%s220 + $0x80] sm:$0xf]
      %v261 = vld [vmem:[%s220 + $0x84] sm:$0xf]
      %v262 = vld [vmem:[%s220 + $0x88] sm:$0xf]
      %v263 = vld [vmem:[%s220 + $0x8c] sm:$0xf]
      %v264 = vld [vmem:[%s220 + $0x90] sm:$0x1]
      %v265 = vld [vmem:[%s1] sm:$0xf]
      %v266 = vld [vmem:[%s1 + $0x4] sm:$0xf]
      %v267 = vld [vmem:[%s1 + $0x8] sm:$0xf]
      %v268 = vld [vmem:[%s1 + $0xc] sm:$0xf]
      %v269 = vld [vmem:[%s220 + $0x90] sm:$0x3]
      %s270 = scalar_lea.vmem %s1, 16
      %v271 = vld [vmem:[%s270] sm:$0xf]
      %v272 = vld [vmem:[%s270 + $0x4] sm:$0xf]
      %v273 = vld [vmem:[%s270 + $0x8] sm:$0xf]
      %v274 = vld [vmem:[%s270 + $0xc] sm:$0xf]
      %v312 = vunpack.c.l.b16 %v228
      %v313 = vunpack.c.l.b16 %v229
      %v314 = vunpack.c.l.b16 %v230
      %v315 = vunpack.c.l.b16 %v231
      %v316 = vunpack.c.l.b16 %v232
      %v317 = vunpack.c.l.b16 %v233
      %v318 = vunpack.c.l.b16 %v234
      %v319 = vunpack.c.l.b16 %v235
      %v320 = vunpack.c.l.b16 %v236
      %v321 = vunpack.c.l.b16 %v237
      %v322 = vunpack.c.l.b16 %v238
      %v323 = vunpack.c.l.b16 %v239
      %v324 = vunpack.c.l.b16 %v240
      %v325 = vunpack.c.l.b16 %v241
      %v326 = vunpack.c.l.b16 %v242
      %v327 = vunpack.c.l.b16 %v243
      %v328 = vunpack.c.l.b16 %v244
      %v329 = vunpack.c.l.b16 %v245
      %v330 = vunpack.c.l.b16 %v246
      %v331 = vunpack.c.l.b16 %v247
      %v332 = vunpack.c.l.b16 %v248
      %v333 = vunpack.c.l.b16 %v249
      %v334 = vunpack.c.l.b16 %v250
      %v335 = vunpack.c.l.b16 %v251
      %v336 = vunpack.c.l.b16 %v252
      %v337 = vunpack.c.l.b16 %v253
      %v338 = vunpack.c.l.b16 %v254
      %v339 = vunpack.c.l.b16 %v255
      %v340 = vunpack.c.l.b16 %v256
      %v341 = vunpack.c.l.b16 %v257
      %v342 = vunpack.c.l.b16 %v258
      %v343 = vunpack.c.l.b16 %v259
      %v344 = vunpack.c.l.b16 %v260
      %v345 = vunpack.c.l.b16 %v261
      %v346 = vunpack.c.l.b16 %v262
      %v347 = vunpack.c.l.b16 %v263
      %v348 = vunpack.c.l.b16 %v269
      %v349 = vpack.c.b16 %v313, %v312
      %v350 = vpack.c.b16 %v315, %v314
      %v351 = vpack.c.b16 %v317, %v316
      %v352 = vpack.c.b16 %v319, %v318
      %v353 = vpack.c.b16 %v321, %v320
      %v354 = vpack.c.b16 %v323, %v322
      %v355 = vpack.c.b16 %v325, %v324
      %v356 = vpack.c.b16 %v327, %v326
      %v357 = vpack.c.b16 %v329, %v328
      %v358 = vpack.c.b16 %v331, %v330
      %v359 = vpack.c.b16 %v333, %v332
      %v360 = vpack.c.b16 %v335, %v334
      %v361 = vpack.c.b16 %v337, %v336
      %v362 = vpack.c.b16 %v339, %v338
      %v363 = vpack.c.b16 %v341, %v340
      %v364 = vpack.c.b16 %v343, %v342
      %v365 = vpack.c.b16 %v345, %v344
      %v366 = vpack.c.b16 %v347, %v346
      %v367 = vpack.c.b16 %v348, %v348
      %vm368 = vsmask.f32 7424
      %v370 = vshrl.u32 %v349, 16
      %v372 = vshll.u32 %v349, 16
      %v374 = vrot.slane %v372, 1
      %v375 = vor.u32 %v370, %v374
      %v377 = vshll.u32 %v350, 16
      %v379 = vrot.slane %v377, 1
      %v380 = vsel %vm368, %v375, %v379
      %v381 = vshrl.u32 %v350, 16
      %v383 = vor.u32 %v381, %v379
      %v385 = vshll.u32 %v351, 16
      %v387 = vrot.slane %v385, 1
      %v388 = vsel %vm368, %v383, %v387
      %v389 = vshrl.u32 %v351, 16
      %v391 = vor.u32 %v389, %v387
      %v393 = vshll.u32 %v352, 16
      %v395 = vrot.slane %v393, 1
      %v396 = vsel %vm368, %v391, %v395
      %v397 = vshrl.u32 %v352, 16
      %v399 = vor.u32 %v397, %v395
      %v401 = vshll.u32 %v353, 16
      %v403 = vrot.slane %v401, 1
      %v404 = vsel %vm368, %v399, %v403
      %v405 = vshrl.u32 %v353, 16
      %v407 = vor.u32 %v405, %v403
      %v409 = vshll.u32 %v354, 16
      %v411 = vrot.slane %v409, 1
      %v412 = vsel %vm368, %v407, %v411
      %v413 = vshrl.u32 %v354, 16
      %v415 = vor.u32 %v413, %v411
      %v417 = vshll.u32 %v355, 16
      %v419 = vrot.slane %v417, 1
      %v420 = vsel %vm368, %v415, %v419
      %v421 = vshrl.u32 %v355, 16
      %v423 = vor.u32 %v421, %v419
      %v425 = vshll.u32 %v356, 16
      %v427 = vrot.slane %v425, 1
      %v428 = vsel %vm368, %v423, %v427
      %v429 = vshrl.u32 %v356, 16
      %v431 = vor.u32 %v429, %v427
      %v433 = vshll.u32 %v357, 16
      %v435 = vrot.slane %v433, 1
      %v436 = vsel %vm368, %v431, %v435
      %v437 = vshrl.u32 %v357, 16
      %v439 = vor.u32 %v437, %v435
      %v441 = vshll.u32 %v358, 16
      %v443 = vrot.slane %v441, 1
      %v444 = vsel %vm368, %v439, %v443
      %v445 = vshrl.u32 %v358, 16
      %v447 = vor.u32 %v445, %v443
      %v449 = vshll.u32 %v359, 16
      %v451 = vrot.slane %v449, 1
      %v452 = vsel %vm368, %v447, %v451
      %v453 = vshrl.u32 %v359, 16
      %v455 = vor.u32 %v453, %v451
      %v457 = vshll.u32 %v360, 16
      %v459 = vrot.slane %v457, 1
      %v460 = vsel %vm368, %v455, %v459
      %v461 = vshrl.u32 %v360, 16
      %v463 = vor.u32 %v461, %v459
      %v465 = vshll.u32 %v361, 16
      %v467 = vrot.slane %v465, 1
      %v468 = vsel %vm368, %v463, %v467
      %v469 = vshrl.u32 %v361, 16
      %v471 = vor.u32 %v469, %v467
      %v473 = vshll.u32 %v362, 16
      %v475 = vrot.slane %v473, 1
      %v476 = vsel %vm368, %v471, %v475
      %v477 = vshrl.u32 %v362, 16
      %v479 = vor.u32 %v477, %v475
      %v481 = vshll.u32 %v363, 16
      %v483 = vrot.slane %v481, 1
      %v484 = vsel %vm368, %v479, %v483
      %v485 = vshrl.u32 %v363, 16
      %v487 = vor.u32 %v485, %v483
      %v489 = vshll.u32 %v364, 16
      %v491 = vrot.slane %v489, 1
      %v492 = vsel %vm368, %v487, %v491
      %v493 = vshrl.u32 %v364, 16
      %v495 = vor.u32 %v493, %v491
      %v497 = vshll.u32 %v365, 16
      %v499 = vrot.slane %v497, 1
      %v500 = vsel %vm368, %v495, %v499
      %v501 = vshrl.u32 %v365, 16
      %v503 = vor.u32 %v501, %v499
      %v505 = vshll.u32 %v366, 16
      %v507 = vrot.slane %v505, 1
      %v508 = vsel %vm368, %v503, %v507
      %v509 = vshrl.u32 %v366, 16
      %v511 = vor.u32 %v509, %v507
      %v513 = vshll.u32 %v367, 16
      %v515 = vrot.slane %v513, 1
      %v516 = vsel %vm368, %v511, %v515
      %v517 = vshrl.u32 %v367, 16
      %v519 = vor.u32 %v517, %v515
      %v524 = vunpack.c.l.b16 %v271
      %v525 = vunpack.c.l.b16 %v272
      %v526 = vunpack.c.l.b16 %v273
      %v527 = vunpack.c.l.b16 %v274
      %v528 = vpack.c.b16 %v525, %v524
      %v529 = vpack.c.b16 %v527, %v526
      %vm532 = vcmask 261120
      %v534 = vsel %vm532, %v380, 0
      %v537 = vsel %vm532, %v388, 0
      %v540 = vsel %vm532, %v396, 0
      %v543 = vsel %vm532, %v404, 0
      %v546 = vsel %vm532, %v412, 0
      %v549 = vsel %vm532, %v420, 0
      %v552 = vsel %vm532, %v428, 0
      %v555 = vsel %vm532, %v436, 0
      %v558 = vsel %vm532, %v444, 0
      %v561 = vsel %vm532, %v452, 0
      %v564 = vsel %vm532, %v460, 0
      %v567 = vsel %vm532, %v468, 0
      %v570 = vsel %vm532, %v476, 0
      %v573 = vsel %vm532, %v484, 0
      %v576 = vsel %vm532, %v492, 0
      %v579 = vsel %vm532, %v500, 0
      %v582 = vsel %vm532, %v508, 0
      %v585 = vsel %vm532, %v516, 0
      %v588 = vsel %vm532, %v519, 0
      %590 = vmatpush.bf16.msra.mxu0 0
      %591 = vmatpush.bf16.msra.mxu0 0
      %592 = vmatpush.bf16.msra.mxu0 0
      %593 = vmatpush.bf16.msra.mxu0 0
      %594 = vmatpush.bf16.msra.mxu0 0
      %595 = vmatpush.bf16.msra.mxu0 0
      %596 = vmatpush.bf16.msra.mxu0 %v529
      %597 = vmatpush.bf16.msra.mxu0 %v528
      %598 = vmatmul.bf16.gmra.mxu0 %v534
      %v599 = vpop.f32.mrf.mxu0
      %v600 = vadd.f32 0.0, %v599
      %v601 = vpop.f32.mrf.mxu0
      %v602 = vadd.f32 0.0, %v601
      %603 = vmatmul.bf16.gmra.mxu0 %v537
      %v604 = vpop.f32.mrf.mxu0
      %v605 = vadd.f32 0.0, %v604
      %v606 = vpop.f32.mrf.mxu0
      %v607 = vadd.f32 0.0, %v606
      %608 = vmatmul.bf16.gmra.mxu0 %v540
      %v609 = vpop.f32.mrf.mxu0
      %v610 = vadd.f32 0.0, %v609
      %v611 = vpop.f32.mrf.mxu0
      %v612 = vadd.f32 0.0, %v611
      %613 = vmatmul.bf16.gmra.mxu0 %v543
      %v614 = vpop.f32.mrf.mxu0
      %v615 = vadd.f32 0.0, %v614
      %v616 = vpop.f32.mrf.mxu0
      %v617 = vadd.f32 0.0, %v616
      %618 = vmatmul.bf16.gmra.mxu0 %v546
      %v619 = vpop.f32.mrf.mxu0
      %v620 = vadd.f32 0.0, %v619
      %v621 = vpop.f32.mrf.mxu0
      %v622 = vadd.f32 0.0, %v621
      %623 = vmatmul.bf16.gmra.mxu0 %v549
      %v624 = vpop.f32.mrf.mxu0
      %v625 = vadd.f32 0.0, %v624
      %v626 = vpop.f32.mrf.mxu0
      %v627 = vadd.f32 0.0, %v626
      %628 = vmatmul.bf16.gmra.mxu0 %v552
      %v629 = vpop.f32.mrf.mxu0
      %v630 = vadd.f32 0.0, %v629
      %v631 = vpop.f32.mrf.mxu0
      %v632 = vadd.f32 0.0, %v631
      %633 = vmatmul.bf16.gmra.mxu0 %v555
      %v634 = vpop.f32.mrf.mxu0
      %v635 = vadd.f32 0.0, %v634
      %v636 = vpop.f32.mrf.mxu0
      %v637 = vadd.f32 0.0, %v636
      %638 = vmatmul.bf16.gmra.mxu0 %v558
      %v639 = vpop.f32.mrf.mxu0
      %v640 = vadd.f32 0.0, %v639
      %v641 = vpop.f32.mrf.mxu0
      %v642 = vadd.f32 0.0, %v641
      %643 = vmatmul.bf16.gmra.mxu0 %v561
      %v644 = vpop.f32.mrf.mxu0
      %v645 = vadd.f32 0.0, %v644
      %v646 = vpop.f32.mrf.mxu0
      %v647 = vadd.f32 0.0, %v646
      %648 = vmatmul.bf16.gmra.mxu0 %v564
      %v649 = vpop.f32.mrf.mxu0
      %v650 = vadd.f32 0.0, %v649
      %v651 = vpop.f32.mrf.mxu0
      %v652 = vadd.f32 0.0, %v651
      %653 = vmatmul.bf16.gmra.mxu0 %v567
      %v654 = vpop.f32.mrf.mxu0
      %v655 = vadd.f32 0.0, %v654
      %v656 = vpop.f32.mrf.mxu0
      %v657 = vadd.f32 0.0, %v656
      %658 = vmatmul.bf16.gmra.mxu0 %v570
      %v659 = vpop.f32.mrf.mxu0
      %v660 = vadd.f32 0.0, %v659
      %v661 = vpop.f32.mrf.mxu0
      %v662 = vadd.f32 0.0, %v661
      %663 = vmatmul.bf16.gmra.mxu0 %v573
      %v664 = vpop.f32.mrf.mxu0
      %v665 = vadd.f32 0.0, %v664
      %v666 = vpop.f32.mrf.mxu0
      %v667 = vadd.f32 0.0, %v666
      %668 = vmatmul.bf16.gmra.mxu0 %v576
      %v669 = vpop.f32.mrf.mxu0
      %v670 = vadd.f32 0.0, %v669
      %v671 = vpop.f32.mrf.mxu0
      %v672 = vadd.f32 0.0, %v671
      %673 = vmatmul.bf16.gmra.mxu0 %v579
      %v674 = vpop.f32.mrf.mxu0
      %v675 = vadd.f32 0.0, %v674
      %v676 = vpop.f32.mrf.mxu0
      %v677 = vadd.f32 0.0, %v676
      %678 = vmatmul.bf16.gmra.mxu0 %v582
      %v679 = vpop.f32.mrf.mxu0
      %v680 = vadd.f32 0.0, %v679
      %v681 = vpop.f32.mrf.mxu0
      %v682 = vadd.f32 0.0, %v681
      %683 = vmatmul.bf16.gmra.mxu0 %v585
      %v684 = vpop.f32.mrf.mxu0
      %v685 = vadd.f32 0.0, %v684
      %v686 = vpop.f32.mrf.mxu0
      %v687 = vadd.f32 0.0, %v686
      %688 = vmatmul.bf16.gmra.mxu0 %v588
      %v689 = vpop.f32.mrf.mxu0
      %v690 = vadd.f32 0.0, %v689
      %v691 = vpop.f32.mrf.mxu0
      %692 = vdwg.mxu0
      %v694 = vunpack.c.l.b16 %v264
      %v695 = vpack.c.b16 %v694, %v694
      %v700 = vunpack.c.l.b16 %v265
      %v701 = vunpack.c.l.b16 %v266
      %v702 = vunpack.c.l.b16 %v267
      %v703 = vunpack.c.l.b16 %v268
      %v704 = vpack.c.b16 %v701, %v700
      %v705 = vpack.c.b16 %v703, %v702
      %v708 = vsel %vm532, %v349, 0
      %v710 = vsel %vm532, %v350, 0
      %v712 = vsel %vm532, %v351, 0
      %v714 = vsel %vm532, %v352, 0
      %v716 = vsel %vm532, %v353, 0
      %v718 = vsel %vm532, %v354, 0
      %v720 = vsel %vm532, %v355, 0
      %v722 = vsel %vm532, %v356, 0
      %v724 = vsel %vm532, %v357, 0
      %v726 = vsel %vm532, %v358, 0
      %v728 = vsel %vm532, %v359, 0
      %v730 = vsel %vm532, %v360, 0
      %v732 = vsel %vm532, %v361, 0
      %v734 = vsel %vm532, %v362, 0
      %v736 = vsel %vm532, %v363, 0
      %v738 = vsel %vm532, %v364, 0
      %v740 = vsel %vm532, %v365, 0
      %v742 = vsel %vm532, %v366, 0
      %v745 = vsel %vm532, %v695, 0
      %747 = vmatpush.bf16.msra.mxu0 0
      %748 = vmatpush.bf16.msra.mxu0 0
      %749 = vmatpush.bf16.msra.mxu0 0
      %750 = vmatpush.bf16.msra.mxu0 0
      %751 = vmatpush.bf16.msra.mxu0 0
      %752 = vmatpush.bf16.msra.mxu0 0
      %753 = vmatpush.bf16.msra.mxu0 %v705
      %754 = vmatpush.bf16.msra.mxu0 %v704
      %755 = vmatmul.bf16.gmra.mxu0 %v708
      %v756 = vpop.f32.mrf.mxu0
      %v757 = vadd.f32 %v600, %v756
      %v758 = vpop.f32.mrf.mxu0
      %v759 = vadd.f32 %v602, %v758
      %760 = vmatmul.bf16.gmra.mxu0 %v710
      %v761 = vpop.f32.mrf.mxu0
      %v762 = vadd.f32 %v605, %v761
      %v763 = vpop.f32.mrf.mxu0
      %v764 = vadd.f32 %v607, %v763
      %765 = vmatmul.bf16.gmra.mxu0 %v712
      %v766 = vpop.f32.mrf.mxu0
      %v767 = vadd.f32 %v610, %v766
      %v768 = vpop.f32.mrf.mxu0
      %v769 = vadd.f32 %v612, %v768
      %770 = vmatmul.bf16.gmra.mxu0 %v714
      %v771 = vpop.f32.mrf.mxu0
      %v772 = vadd.f32 %v615, %v771
      %v773 = vpop.f32.mrf.mxu0
      %v774 = vadd.f32 %v617, %v773
      %775 = vmatmul.bf16.gmra.mxu0 %v716
      %v776 = vpop.f32.mrf.mxu0
      %v777 = vadd.f32 %v620, %v776
      %v778 = vpop.f32.mrf.mxu0
      %v779 = vadd.f32 %v622, %v778
      %780 = vmatmul.bf16.gmra.mxu0 %v718
      %v781 = vpop.f32.mrf.mxu0
      %v782 = vadd.f32 %v625, %v781
      %v783 = vpop.f32.mrf.mxu0
      %v784 = vadd.f32 %v627, %v783
      %785 = vmatmul.bf16.gmra.mxu0 %v720
      %v786 = vpop.f32.mrf.mxu0
      %v787 = vadd.f32 %v630, %v786
      %v788 = vpop.f32.mrf.mxu0
      %v789 = vadd.f32 %v632, %v788
      %790 = vmatmul.bf16.gmra.mxu0 %v722
      %v791 = vpop.f32.mrf.mxu0
      %v792 = vadd.f32 %v635, %v791
      %v793 = vpop.f32.mrf.mxu0
      %v794 = vadd.f32 %v637, %v793
      %795 = vmatmul.bf16.gmra.mxu0 %v724
      %v796 = vpop.f32.mrf.mxu0
      %v797 = vadd.f32 %v640, %v796
      %v798 = vpop.f32.mrf.mxu0
      %v799 = vadd.f32 %v642, %v798
      %800 = vmatmul.bf16.gmra.mxu0 %v726
      %v801 = vpop.f32.mrf.mxu0
      %v802 = vadd.f32 %v645, %v801
      %v803 = vpop.f32.mrf.mxu0
      %v804 = vadd.f32 %v647, %v803
      %805 = vmatmul.bf16.gmra.mxu0 %v728
      %v806 = vpop.f32.mrf.mxu0
      %v807 = vadd.f32 %v650, %v806
      %v808 = vpop.f32.mrf.mxu0
      %v809 = vadd.f32 %v652, %v808
      %810 = vmatmul.bf16.gmra.mxu0 %v730
      %v811 = vpop.f32.mrf.mxu0
      %v812 = vadd.f32 %v655, %v811
      %v813 = vpop.f32.mrf.mxu0
      %v814 = vadd.f32 %v657, %v813
      %815 = vmatmul.bf16.gmra.mxu0 %v732
      %v816 = vpop.f32.mrf.mxu0
      %v817 = vadd.f32 %v660, %v816
      %v818 = vpop.f32.mrf.mxu0
      %v819 = vadd.f32 %v662, %v818
      %820 = vmatmul.bf16.gmra.mxu0 %v734
      %v821 = vpop.f32.mrf.mxu0
      %v822 = vadd.f32 %v665, %v821
      %v823 = vpop.f32.mrf.mxu0
      %v824 = vadd.f32 %v667, %v823
      %825 = vmatmul.bf16.gmra.mxu0 %v736
      %v826 = vpop.f32.mrf.mxu0
      %v827 = vadd.f32 %v670, %v826
      %v828 = vpop.f32.mrf.mxu0
      %v829 = vadd.f32 %v672, %v828
      %830 = vmatmul.bf16.gmra.mxu0 %v738
      %v831 = vpop.f32.mrf.mxu0
      %v832 = vadd.f32 %v675, %v831
      %v833 = vpop.f32.mrf.mxu0
      %v834 = vadd.f32 %v677, %v833
      %835 = vmatmul.bf16.gmra.mxu0 %v740
      %v836 = vpop.f32.mrf.mxu0
      %v837 = vadd.f32 %v680, %v836
      %v838 = vpop.f32.mrf.mxu0
      %v839 = vadd.f32 %v682, %v838
      %840 = vmatmul.bf16.gmra.mxu0 %v742
      %v841 = vpop.f32.mrf.mxu0
      %v842 = vadd.f32 %v685, %v841
      %v843 = vpop.f32.mrf.mxu0
      %v844 = vadd.f32 %v687, %v843
      %845 = vmatmul.bf16.gmra.mxu0 %v745
      %v846 = vpop.f32.mrf.mxu0
      %v847 = vadd.f32 %v690, %v846
      %v848 = vpop.f32.mrf.mxu0
      %849 = vdwg.mxu0
      %v850 = vld [vmem:[%s220] sm:$0xe]
      %s851 = scalar_lea.vmem %s1, 32
      %v852 = vld [vmem:[%s851] sm:$0xf]
      %v853 = vld [vmem:[%s851 + $0x4] sm:$0xf]
      %v854 = vld [vmem:[%s851 + $0x8] sm:$0xf]
      %v855 = vld [vmem:[%s851 + $0xc] sm:$0xf]
      %v857 = vunpack.c.l.b16 %v850
      %v858 = vpack.c.b16 %v313, %v857
      %vm859 = vcmask 1046528
      %v860 = vrot.slane %v858, 1
      %v861 = vrot.slane %v350, 1
      %v862 = vsel %vm859, %v860, %v861
      %v863 = vrot.slane %v351, 1
      %v864 = vsel %vm859, %v861, %v863
      %v865 = vrot.slane %v352, 1
      %v866 = vsel %vm859, %v863, %v865
      %v867 = vrot.slane %v353, 1
      %v868 = vsel %vm859, %v865, %v867
      %v869 = vrot.slane %v354, 1
      %v870 = vsel %vm859, %v867, %v869
      %v871 = vrot.slane %v355, 1
      %v872 = vsel %vm859, %v869, %v871
      %v873 = vrot.slane %v356, 1
      %v874 = vsel %vm859, %v871, %v873
      %v875 = vrot.slane %v357, 1
      %v876 = vsel %vm859, %v873, %v875
      %v877 = vrot.slane %v358, 1
      %v878 = vsel %vm859, %v875, %v877
      %v879 = vrot.slane %v359, 1
      %v880 = vsel %vm859, %v877, %v879
      %v881 = vrot.slane %v360, 1
      %v882 = vsel %vm859, %v879, %v881
      %v883 = vrot.slane %v361, 1
      %v884 = vsel %vm859, %v881, %v883
      %v885 = vrot.slane %v362, 1
      %v886 = vsel %vm859, %v883, %v885
      %v887 = vrot.slane %v363, 1
      %v888 = vsel %vm859, %v885, %v887
      %v889 = vrot.slane %v364, 1
      %v890 = vsel %vm859, %v887, %v889
      %v891 = vrot.slane %v365, 1
      %v892 = vsel %vm859, %v889, %v891
      %v893 = vrot.slane %v366, 1
      %v894 = vsel %vm859, %v891, %v893
      %v895 = vrot.slane %v367, 1
      %v896 = vsel %vm859, %v893, %v895
      %v901 = vunpack.c.l.b16 %v852
      %v902 = vunpack.c.l.b16 %v853
      %v903 = vunpack.c.l.b16 %v854
      %v904 = vunpack.c.l.b16 %v855
      %v905 = vpack.c.b16 %v902, %v901
      %v906 = vpack.c.b16 %v904, %v903
      %v910 = vsel %vm532, %v862, 0
      %v913 = vsel %vm532, %v864, 0
      %v916 = vsel %vm532, %v866, 0
      %v919 = vsel %vm532, %v868, 0
      %v922 = vsel %vm532, %v870, 0
      %v925 = vsel %vm532, %v872, 0
      %v928 = vsel %vm532, %v874, 0
      %v931 = vsel %vm532, %v876, 0
      %v934 = vsel %vm532, %v878, 0
      %v937 = vsel %vm532, %v880, 0
      %v940 = vsel %vm532, %v882, 0
      %v943 = vsel %vm532, %v884, 0
      %v946 = vsel %vm532, %v886, 0
      %v949 = vsel %vm532, %v888, 0
      %v952 = vsel %vm532, %v890, 0
      %v955 = vsel %vm532, %v892, 0
      %v958 = vsel %vm532, %v894, 0
      %v961 = vsel %vm532, %v896, 0
      %v964 = vsel %vm532, %v895, 0
      %966 = vmatpush.bf16.msra.mxu0 0
      %967 = vmatpush.bf16.msra.mxu0 0
      %968 = vmatpush.bf16.msra.mxu0 0
      %969 = vmatpush.bf16.msra.mxu0 0
      %970 = vmatpush.bf16.msra.mxu0 0
      %971 = vmatpush.bf16.msra.mxu0 0
      %972 = vmatpush.bf16.msra.mxu0 %v906
      %973 = vmatpush.bf16.msra.mxu0 %v905
      %974 = vmatmul.bf16.gmra.mxu0 %v910
      %v975 = vpop.f32.mrf.mxu0
      %v976 = vadd.f32 0.0, %v975
      %v977 = vpop.f32.mrf.mxu0
      %v978 = vadd.f32 0.0, %v977
      %979 = vmatmul.bf16.gmra.mxu0 %v913
      %v980 = vpop.f32.mrf.mxu0
      %v981 = vadd.f32 0.0, %v980
      %v982 = vpop.f32.mrf.mxu0
      %v983 = vadd.f32 0.0, %v982
      %984 = vmatmul.bf16.gmra.mxu0 %v916
      %v985 = vpop.f32.mrf.mxu0
      %v986 = vadd.f32 0.0, %v985
      %v987 = vpop.f32.mrf.mxu0
      %v988 = vadd.f32 0.0, %v987
      %989 = vmatmul.bf16.gmra.mxu0 %v919
      %v990 = vpop.f32.mrf.mxu0
      %v991 = vadd.f32 0.0, %v990
      %v992 = vpop.f32.mrf.mxu0
      %v993 = vadd.f32 0.0, %v992
      %994 = vmatmul.bf16.gmra.mxu0 %v922
      %v995 = vpop.f32.mrf.mxu0
      %v996 = vadd.f32 0.0, %v995
      %v997 = vpop.f32.mrf.mxu0
      %v998 = vadd.f32 0.0, %v997
      %999 = vmatmul.bf16.gmra.mxu0 %v925
      %v1000 = vpop.f32.mrf.mxu0
      %v1001 = vadd.f32 0.0, %v1000
      %v1002 = vpop.f32.mrf.mxu0
      %v1003 = vadd.f32 0.0, %v1002
      %1004 = vmatmul.bf16.gmra.mxu0 %v928
      %v1005 = vpop.f32.mrf.mxu0
      %v1006 = vadd.f32 0.0, %v1005
      %v1007 = vpop.f32.mrf.mxu0
      %v1008 = vadd.f32 0.0, %v1007
      %1009 = vmatmul.bf16.gmra.mxu0 %v931
      %v1010 = vpop.f32.mrf.mxu0
      %v1011 = vadd.f32 0.0, %v1010
      %v1012 = vpop.f32.mrf.mxu0
      %v1013 = vadd.f32 0.0, %v1012
      %1014 = vmatmul.bf16.gmra.mxu0 %v934
      %v1015 = vpop.f32.mrf.mxu0
      %v1016 = vadd.f32 0.0, %v1015
      %v1017 = vpop.f32.mrf.mxu0
      %v1018 = vadd.f32 0.0, %v1017
      %1019 = vmatmul.bf16.gmra.mxu0 %v937
      %v1020 = vpop.f32.mrf.mxu0
      %v1021 = vadd.f32 0.0, %v1020
      %v1022 = vpop.f32.mrf.mxu0
      %v1023 = vadd.f32 0.0, %v1022
      %1024 = vmatmul.bf16.gmra.mxu0 %v940
      %v1025 = vpop.f32.mrf.mxu0
      %v1026 = vadd.f32 0.0, %v1025
      %v1027 = vpop.f32.mrf.mxu0
      %v1028 = vadd.f32 0.0, %v1027
      %1029 = vmatmul.bf16.gmra.mxu0 %v943
      %v1030 = vpop.f32.mrf.mxu0
      %v1031 = vadd.f32 0.0, %v1030
      %v1032 = vpop.f32.mrf.mxu0
      %v1033 = vadd.f32 0.0, %v1032
      %1034 = vmatmul.bf16.gmra.mxu0 %v946
      %v1035 = vpop.f32.mrf.mxu0
      %v1036 = vadd.f32 0.0, %v1035
      %v1037 = vpop.f32.mrf.mxu0
      %v1038 = vadd.f32 0.0, %v1037
      %1039 = vmatmul.bf16.gmra.mxu0 %v949
      %v1040 = vpop.f32.mrf.mxu0
      %v1041 = vadd.f32 0.0, %v1040
      %v1042 = vpop.f32.mrf.mxu0
      %v1043 = vadd.f32 0.0, %v1042
      %1044 = vmatmul.bf16.gmra.mxu0 %v952
      %v1045 = vpop.f32.mrf.mxu0
      %v1046 = vadd.f32 0.0, %v1045
      %v1047 = vpop.f32.mrf.mxu0
      %v1048 = vadd.f32 0.0, %v1047
      %1049 = vmatmul.bf16.gmra.mxu0 %v955
      %v1050 = vpop.f32.mrf.mxu0
      %v1051 = vadd.f32 0.0, %v1050
      %v1052 = vpop.f32.mrf.mxu0
      %v1053 = vadd.f32 0.0, %v1052
      %1054 = vmatmul.bf16.gmra.mxu0 %v958
      %v1055 = vpop.f32.mrf.mxu0
      %v1056 = vadd.f32 0.0, %v1055
      %v1057 = vpop.f32.mrf.mxu0
      %v1058 = vadd.f32 0.0, %v1057
      %1059 = vmatmul.bf16.gmra.mxu0 %v961
      %v1060 = vpop.f32.mrf.mxu0
      %v1061 = vadd.f32 0.0, %v1060
      %v1062 = vpop.f32.mrf.mxu0
      %v1063 = vadd.f32 0.0, %v1062
      %1064 = vmatmul.bf16.gmra.mxu0 %v964
      %v1065 = vpop.f32.mrf.mxu0
      %v1066 = vadd.f32 0.0, %v1065
      %v1067 = vpop.f32.mrf.mxu0
      %1068 = vdwg.mxu0
      %v1069 = vadd.f32 %v757, %v976
      %v1070 = vadd.f32 %v759, %v978
      %v1071 = vadd.f32 %v762, %v981
      %v1072 = vadd.f32 %v764, %v983
      %v1073 = vadd.f32 %v767, %v986
      %v1074 = vadd.f32 %v769, %v988
      %v1075 = vadd.f32 %v772, %v991
      %v1076 = vadd.f32 %v774, %v993
      %v1077 = vadd.f32 %v777, %v996
      %v1078 = vadd.f32 %v779, %v998
      %v1079 = vadd.f32 %v782, %v1001
      %v1080 = vadd.f32 %v784, %v1003
      %v1081 = vadd.f32 %v787, %v1006
      %v1082 = vadd.f32 %v789, %v1008
      %v1083 = vadd.f32 %v792, %v1011
      %v1084 = vadd.f32 %v794, %v1013
      %v1085 = vadd.f32 %v797, %v1016
      %v1086 = vadd.f32 %v799, %v1018
      %v1087 = vadd.f32 %v802, %v1021
      %v1088 = vadd.f32 %v804, %v1023
      %v1089 = vadd.f32 %v807, %v1026
      %v1090 = vadd.f32 %v809, %v1028
      %v1091 = vadd.f32 %v812, %v1031
      %v1092 = vadd.f32 %v814, %v1033
      %v1093 = vadd.f32 %v817, %v1036
      %v1094 = vadd.f32 %v819, %v1038
      %v1095 = vadd.f32 %v822, %v1041
      %v1096 = vadd.f32 %v824, %v1043
      %v1097 = vadd.f32 %v827, %v1046
      %v1098 = vadd.f32 %v829, %v1048
      %v1099 = vadd.f32 %v832, %v1051
      %v1100 = vadd.f32 %v834, %v1053
      %v1101 = vadd.f32 %v837, %v1056
      %v1102 = vadd.f32 %v839, %v1058
      %v1103 = vadd.f32 %v842, %v1061
      %v1104 = vadd.f32 %v844, %v1063
      %v1105 = vadd.f32 %v847, %v1066
      %v1106 = vld [vmem:[%s220 + $0x8] sm:$0xe]
      %v1107 = vld [vmem:[%s220 + $0xc] sm:$0xf]
      %v1108 = vld [vmem:[%s220 + $0x10] sm:$0xf]
      %v1109 = vld [vmem:[%s220 + $0x14] sm:$0xf]
      %v1110 = vld [vmem:[%s220 + $0x18] sm:$0xf]
      %v1111 = vld [vmem:[%s220 + $0x1c] sm:$0xf]
      %v1112 = vld [vmem:[%s220 + $0x20] sm:$0xf]
      %v1113 = vld [vmem:[%s220 + $0x24] sm:$0xf]
      %v1114 = vld [vmem:[%s220 + $0x28] sm:$0xf]
      %v1115 = vld [vmem:[%s220 + $0x2c] sm:$0xf]
      %v1116 = vld [vmem:[%s220 + $0x30] sm:$0xf]
      %v1117 = vld [vmem:[%s220 + $0x34] sm:$0xf]
      %v1118 = vld [vmem:[%s220 + $0x38] sm:$0xf]
      %v1119 = vld [vmem:[%s220 + $0x3c] sm:$0xf]
      %v1120 = vld [vmem:[%s220 + $0x40] sm:$0xf]
      %v1121 = vld [vmem:[%s220 + $0x44] sm:$0xf]
      %v1122 = vld [vmem:[%s220 + $0x48] sm:$0xf]
      %v1123 = vld [vmem:[%s220 + $0x4c] sm:$0xf]
      %v1124 = vld [vmem:[%s220 + $0x50] sm:$0xf]
      %v1125 = vld [vmem:[%s220 + $0x54] sm:$0xf]
      %v1126 = vld [vmem:[%s220 + $0x58] sm:$0xf]
      %v1127 = vld [vmem:[%s220 + $0x5c] sm:$0xf]
      %v1128 = vld [vmem:[%s220 + $0x60] sm:$0xf]
      %v1129 = vld [vmem:[%s220 + $0x64] sm:$0xf]
      %v1130 = vld [vmem:[%s220 + $0x68] sm:$0xf]
      %v1131 = vld [vmem:[%s220 + $0x6c] sm:$0xf]
      %v1132 = vld [vmem:[%s220 + $0x70] sm:$0xf]
      %v1133 = vld [vmem:[%s220 + $0x74] sm:$0xf]
      %v1134 = vld [vmem:[%s220 + $0x78] sm:$0xf]
      %v1135 = vld [vmem:[%s220 + $0x7c] sm:$0xf]
      %v1136 = vld [vmem:[%s220 + $0x80] sm:$0xf]
      %v1137 = vld [vmem:[%s220 + $0x84] sm:$0xf]
      %v1138 = vld [vmem:[%s220 + $0x88] sm:$0xf]
      %v1139 = vld [vmem:[%s220 + $0x8c] sm:$0xf]
      %v1140 = vld [vmem:[%s220 + $0x90] sm:$0xf]
      %v1141 = vld [vmem:[%s220 + $0x94] sm:$0xf]
      %v1142 = vld [vmem:[%s220 + $0x98] sm:$0x3]
      %s1143 = scalar_lea.vmem %s1, 48
      %v1144 = vld [vmem:[%s1143] sm:$0xf]
      %v1145 = vld [vmem:[%s1143 + $0x4] sm:$0xf]
      %v1146 = vld [vmem:[%s1143 + $0x8] sm:$0xf]
      %v1147 = vld [vmem:[%s1143 + $0xc] sm:$0xf]
      %v1185 = vunpack.c.l.b16 %v1106
      %v1186 = vunpack.c.l.b16 %v1107
      %v1187 = vunpack.c.l.b16 %v1108
      %v1188 = vunpack.c.l.b16 %v1109
      %v1189 = vunpack.c.l.b16 %v1110
      %v1190 = vunpack.c.l.b16 %v1111
      %v1191 = vunpack.c.l.b16 %v1112
      %v1192 = vunpack.c.l.b16 %v1113
      %v1193 = vunpack.c.l.b16 %v1114
      %v1194 = vunpack.c.l.b16 %v1115
      %v1195 = vunpack.c.l.b16 %v1116
      %v1196 = vunpack.c.l.b16 %v1117
      %v1197 = vunpack.c.l.b16 %v1118
      %v1198 = vunpack.c.l.b16 %v1119
      %v1199 = vunpack.c.l.b16 %v1120
      %v1200 = vunpack.c.l.b16 %v1121
      %v1201 = vunpack.c.l.b16 %v1122
      %v1202 = vunpack.c.l.b16 %v1123
      %v1203 = vunpack.c.l.b16 %v1124
      %v1204 = vunpack.c.l.b16 %v1125
      %v1205 = vunpack.c.l.b16 %v1126
      %v1206 = vunpack.c.l.b16 %v1127
      %v1207 = vunpack.c.l.b16 %v1128
      %v1208 = vunpack.c.l.b16 %v1129
      %v1209 = vunpack.c.l.b16 %v1130
      %v1210 = vunpack.c.l.b16 %v1131
      %v1211 = vunpack.c.l.b16 %v1132
      %v1212 = vunpack.c.l.b16 %v1133
      %v1213 = vunpack.c.l.b16 %v1134
      %v1214 = vunpack.c.l.b16 %v1135
      %v1215 = vunpack.c.l.b16 %v1136
      %v1216 = vunpack.c.l.b16 %v1137
      %v1217 = vunpack.c.l.b16 %v1138
      %v1218 = vunpack.c.l.b16 %v1139
      %v1219 = vunpack.c.l.b16 %v1140
      %v1220 = vunpack.c.l.b16 %v1141
      %v1221 = vunpack.c.l.b16 %v1142
      %v1222 = vpack.c.b16 %v1186, %v1185
      %v1223 = vpack.c.b16 %v1188, %v1187
      %v1224 = vpack.c.b16 %v1190, %v1189
      %v1225 = vpack.c.b16 %v1192, %v1191
      %v1226 = vpack.c.b16 %v1194, %v1193
      %v1227 = vpack.c.b16 %v1196, %v1195
      %v1228 = vpack.c.b16 %v1198, %v1197
      %v1229 = vpack.c.b16 %v1200, %v1199
      %v1230 = vpack.c.b16 %v1202, %v1201
      %v1231 = vpack.c.b16 %v1204, %v1203
      %v1232 = vpack.c.b16 %v1206, %v1205
      %v1233 = vpack.c.b16 %v1208, %v1207
      %v1234 = vpack.c.b16 %v1210, %v1209
      %v1235 = vpack.c.b16 %v1212, %v1211
      %v1236 = vpack.c.b16 %v1214, %v1213
      %v1237 = vpack.c.b16 %v1216, %v1215
      %v1238 = vpack.c.b16 %v1218, %v1217
      %v1239 = vpack.c.b16 %v1220, %v1219
      %v1240 = vpack.c.b16 %v1221, %v1221
      %v1241 = vrot.slane %v1222, 1
      %v1242 = vrot.slane %v1223, 1
      %v1243 = vsel %vm859, %v1241, %v1242
      %v1244 = vrot.slane %v1224, 1
      %v1245 = vsel %vm859, %v1242, %v1244
      %v1246 = vrot.slane %v1225, 1
      %v1247 = vsel %vm859, %v1244, %v1246
      %v1248 = vrot.slane %v1226, 1
      %v1249 = vsel %vm859, %v1246, %v1248
      %v1250 = vrot.slane %v1227, 1
      %v1251 = vsel %vm859, %v1248, %v1250
      %v1252 = vrot.slane %v1228, 1
      %v1253 = vsel %vm859, %v1250, %v1252
      %v1254 = vrot.slane %v1229, 1
      %v1255 = vsel %vm859, %v1252, %v1254
      %v1256 = vrot.slane %v1230, 1
      %v1257 = vsel %vm859, %v1254, %v1256
      %v1258 = vrot.slane %v1231, 1
      %v1259 = vsel %vm859, %v1256, %v1258
      %v1260 = vrot.slane %v1232, 1
      %v1261 = vsel %vm859, %v1258, %v1260
      %v1262 = vrot.slane %v1233, 1
      %v1263 = vsel %vm859, %v1260, %v1262
      %v1264 = vrot.slane %v1234, 1
      %v1265 = vsel %vm859, %v1262, %v1264
      %v1266 = vrot.slane %v1235, 1
      %v1267 = vsel %vm859, %v1264, %v1266
      %v1268 = vrot.slane %v1236, 1
      %v1269 = vsel %vm859, %v1266, %v1268
      %v1270 = vrot.slane %v1237, 1
      %v1271 = vsel %vm859, %v1268, %v1270
      %v1272 = vrot.slane %v1238, 1
      %v1273 = vsel %vm859, %v1270, %v1272
      %v1274 = vrot.slane %v1239, 1
      %v1275 = vsel %vm859, %v1272, %v1274
      %v1276 = vrot.slane %v1240, 1
      %v1277 = vsel %vm859, %v1274, %v1276
      %v1282 = vunpack.c.l.b16 %v1144
      %v1283 = vunpack.c.l.b16 %v1145
      %v1284 = vunpack.c.l.b16 %v1146
      %v1285 = vunpack.c.l.b16 %v1147
      %v1286 = vpack.c.b16 %v1283, %v1282
      %v1287 = vpack.c.b16 %v1285, %v1284
      %v1291 = vsel %vm532, %v1243, 0
      %v1294 = vsel %vm532, %v1245, 0
      %v1297 = vsel %vm532, %v1247, 0
      %v1300 = vsel %vm532, %v1249, 0
      %v1303 = vsel %vm532, %v1251, 0
      %v1306 = vsel %vm532, %v1253, 0
      %v1309 = vsel %vm532, %v1255, 0
      %v1312 = vsel %vm532, %v1257, 0
      %v1315 = vsel %vm532, %v1259, 0
      %v1318 = vsel %vm532, %v1261, 0
      %v1321 = vsel %vm532, %v1263, 0
      %v1324 = vsel %vm532, %v1265, 0
      %v1327 = vsel %vm532, %v1267, 0
      %v1330 = vsel %vm532, %v1269, 0
      %v1333 = vsel %vm532, %v1271, 0
      %v1336 = vsel %vm532, %v1273, 0
      %v1339 = vsel %vm532, %v1275, 0
      %v1342 = vsel %vm532, %v1277, 0
      %v1345 = vsel %vm532, %v1276, 0
      %1347 = vmatpush.bf16.msra.mxu0 0
      %1348 = vmatpush.bf16.msra.mxu0 0
      %1349 = vmatpush.bf16.msra.mxu0 0
      %1350 = vmatpush.bf16.msra.mxu0 0
      %1351 = vmatpush.bf16.msra.mxu0 0
      %1352 = vmatpush.bf16.msra.mxu0 0
      %1353 = vmatpush.bf16.msra.mxu0 %v1287
      %1354 = vmatpush.bf16.msra.mxu0 %v1286
      %1355 = vmatmul.bf16.gmra.mxu0 %v1291
      %v1356 = vpop.f32.mrf.mxu0
      %v1357 = vadd.f32 0.0, %v1356
      %v1358 = vpop.f32.mrf.mxu0
      %v1359 = vadd.f32 0.0, %v1358
      %1360 = vmatmul.bf16.gmra.mxu0 %v1294
      %v1361 = vpop.f32.mrf.mxu0
      %v1362 = vadd.f32 0.0, %v1361
      %v1363 = vpop.f32.mrf.mxu0
      %v1364 = vadd.f32 0.0, %v1363
      %1365 = vmatmul.bf16.gmra.mxu0 %v1297
      %v1366 = vpop.f32.mrf.mxu0
      %v1367 = vadd.f32 0.0, %v1366
      %v1368 = vpop.f32.mrf.mxu0
      %v1369 = vadd.f32 0.0, %v1368
      %1370 = vmatmul.bf16.gmra.mxu0 %v1300
      %v1371 = vpop.f32.mrf.mxu0
      %v1372 = vadd.f32 0.0, %v1371
      %v1373 = vpop.f32.mrf.mxu0
      %v1374 = vadd.f32 0.0, %v1373
      %1375 = vmatmul.bf16.gmra.mxu0 %v1303
      %v1376 = vpop.f32.mrf.mxu0
      %v1377 = vadd.f32 0.0, %v1376
      %v1378 = vpop.f32.mrf.mxu0
      %v1379 = vadd.f32 0.0, %v1378
      %1380 = vmatmul.bf16.gmra.mxu0 %v1306
      %v1381 = vpop.f32.mrf.mxu0
      %v1382 = vadd.f32 0.0, %v1381
      %v1383 = vpop.f32.mrf.mxu0
      %v1384 = vadd.f32 0.0, %v1383
      %1385 = vmatmul.bf16.gmra.mxu0 %v1309
      %v1386 = vpop.f32.mrf.mxu0
      %v1387 = vadd.f32 0.0, %v1386
      %v1388 = vpop.f32.mrf.mxu0
      %v1389 = vadd.f32 0.0, %v1388
      %1390 = vmatmul.bf16.gmra.mxu0 %v1312
      %v1391 = vpop.f32.mrf.mxu0
      %v1392 = vadd.f32 0.0, %v1391
      %v1393 = vpop.f32.mrf.mxu0
      %v1394 = vadd.f32 0.0, %v1393
      %1395 = vmatmul.bf16.gmra.mxu0 %v1315
      %v1396 = vpop.f32.mrf.mxu0
      %v1397 = vadd.f32 0.0, %v1396
      %v1398 = vpop.f32.mrf.mxu0
      %v1399 = vadd.f32 0.0, %v1398
      %1400 = vmatmul.bf16.gmra.mxu0 %v1318
      %v1401 = vpop.f32.mrf.mxu0
      %v1402 = vadd.f32 0.0, %v1401
      %v1403 = vpop.f32.mrf.mxu0
      %v1404 = vadd.f32 0.0, %v1403
      %1405 = vmatmul.bf16.gmra.mxu0 %v1321
      %v1406 = vpop.f32.mrf.mxu0
      %v1407 = vadd.f32 0.0, %v1406
      %v1408 = vpop.f32.mrf.mxu0
      %v1409 = vadd.f32 0.0, %v1408
      %1410 = vmatmul.bf16.gmra.mxu0 %v1324
      %v1411 = vpop.f32.mrf.mxu0
      %v1412 = vadd.f32 0.0, %v1411
      %v1413 = vpop.f32.mrf.mxu0
      %v1414 = vadd.f32 0.0, %v1413
      %1415 = vmatmul.bf16.gmra.mxu0 %v1327
      %v1416 = vpop.f32.mrf.mxu0
      %v1417 = vadd.f32 0.0, %v1416
      %v1418 = vpop.f32.mrf.mxu0
      %v1419 = vadd.f32 0.0, %v1418
      %1420 = vmatmul.bf16.gmra.mxu0 %v1330
      %v1421 = vpop.f32.mrf.mxu0
      %v1422 = vadd.f32 0.0, %v1421
      %v1423 = vpop.f32.mrf.mxu0
      %v1424 = vadd.f32 0.0, %v1423
      %1425 = vmatmul.bf16.gmra.mxu0 %v1333
      %v1426 = vpop.f32.mrf.mxu0
      %v1427 = vadd.f32 0.0, %v1426
      %v1428 = vpop.f32.mrf.mxu0
      %v1429 = vadd.f32 0.0, %v1428
      %1430 = vmatmul.bf16.gmra.mxu0 %v1336
      %v1431 = vpop.f32.mrf.mxu0
      %v1432 = vadd.f32 0.0, %v1431
      %v1433 = vpop.f32.mrf.mxu0
      %v1434 = vadd.f32 0.0, %v1433
      %1435 = vmatmul.bf16.gmra.mxu0 %v1339
      %v1436 = vpop.f32.mrf.mxu0
      %v1437 = vadd.f32 0.0, %v1436
      %v1438 = vpop.f32.mrf.mxu0
      %v1439 = vadd.f32 0.0, %v1438
      %1440 = vmatmul.bf16.gmra.mxu0 %v1342
      %v1441 = vpop.f32.mrf.mxu0
      %v1442 = vadd.f32 0.0, %v1441
      %v1443 = vpop.f32.mrf.mxu0
      %v1444 = vadd.f32 0.0, %v1443
      %1445 = vmatmul.bf16.gmra.mxu0 %v1345
      %v1446 = vpop.f32.mrf.mxu0
      %v1447 = vadd.f32 0.0, %v1446
      %v1448 = vpop.f32.mrf.mxu0
      %1449 = vdwg.mxu0
      %v1450 = vadd.f32 %v1069, %v1357
      %v1451 = vadd.f32 %v1070, %v1359
      %v1452 = vadd.f32 %v1071, %v1362
      %v1453 = vadd.f32 %v1072, %v1364
      %v1454 = vadd.f32 %v1073, %v1367
      %v1455 = vadd.f32 %v1074, %v1369
      %v1456 = vadd.f32 %v1075, %v1372
      %v1457 = vadd.f32 %v1076, %v1374
      %v1458 = vadd.f32 %v1077, %v1377
      %v1459 = vadd.f32 %v1078, %v1379
      %v1460 = vadd.f32 %v1079, %v1382
      %v1461 = vadd.f32 %v1080, %v1384
      %v1462 = vadd.f32 %v1081, %v1387
      %v1463 = vadd.f32 %v1082, %v1389
      %v1464 = vadd.f32 %v1083, %v1392
      %v1465 = vadd.f32 %v1084, %v1394
      %v1466 = vadd.f32 %v1085, %v1397
      %v1467 = vadd.f32 %v1086, %v1399
      %v1468 = vadd.f32 %v1087, %v1402
      %v1469 = vadd.f32 %v1088, %v1404
      %v1470 = vadd.f32 %v1089, %v1407
      %v1471 = vadd.f32 %v1090, %v1409
      %v1472 = vadd.f32 %v1091, %v1412
      %v1473 = vadd.f32 %v1092, %v1414
      %v1474 = vadd.f32 %v1093, %v1417
      %v1475 = vadd.f32 %v1094, %v1419
      %v1476 = vadd.f32 %v1095, %v1422
      %v1477 = vadd.f32 %v1096, %v1424
      %v1478 = vadd.f32 %v1097, %v1427
      %v1479 = vadd.f32 %v1098, %v1429
      %v1480 = vadd.f32 %v1099, %v1432
      %v1481 = vadd.f32 %v1100, %v1434
      %v1482 = vadd.f32 %v1101, %v1437
      %v1483 = vadd.f32 %v1102, %v1439
      %v1484 = vadd.f32 %v1103, %v1442
      %v1485 = vadd.f32 %v1104, %v1444
      %v1486 = vadd.f32 %v1105, %v1447
      %v1487 = vld [vmem:[%s220 + $0x98] sm:$0x7]
      %s1488 = scalar_lea.vmem %s1, 64
      %v1489 = vld [vmem:[%s1488] sm:$0xf]
      %v1490 = vld [vmem:[%s1488 + $0x4] sm:$0xf]
      %v1491 = vld [vmem:[%s1488 + $0x8] sm:$0xf]
      %v1492 = vld [vmem:[%s1488 + $0xc] sm:$0xf]
      %v1494 = vunpack.c.l.b16 %v1487
      %v1495 = vpack.c.b16 %v1494, %v1494
      %vm1496 = vsmask.f32 6400
      %v1498 = vshrl.u32 %v1222, 16
      %v1500 = vrot.slane %v1498, 1
      %v1501 = vshll.u32 %v1222, 16
      %v1503 = vrot.slane %v1501, 2
      %v1504 = vor.u32 %v1500, %v1503
      %v1506 = vshrl.u32 %v1223, 16
      %v1508 = vrot.slane %v1506, 1
      %v1509 = vshll.u32 %v1223, 16
      %v1511 = vrot.slane %v1509, 2
      %v1512 = vor.u32 %v1508, %v1511
      %v1513 = vsel %vm1496, %v1504, %v1512
      %v1515 = vshrl.u32 %v1224, 16
      %v1517 = vrot.slane %v1515, 1
      %v1518 = vshll.u32 %v1224, 16
      %v1520 = vrot.slane %v1518, 2
      %v1521 = vor.u32 %v1517, %v1520
      %v1522 = vsel %vm1496, %v1512, %v1521
      %v1524 = vshrl.u32 %v1225, 16
      %v1526 = vrot.slane %v1524, 1
      %v1527 = vshll.u32 %v1225, 16
      %v1529 = vrot.slane %v1527, 2
      %v1530 = vor.u32 %v1526, %v1529
      %v1531 = vsel %vm1496, %v1521, %v1530
      %v1533 = vshrl.u32 %v1226, 16
      %v1535 = vrot.slane %v1533, 1
      %v1536 = vshll.u32 %v1226, 16
      %v1538 = vrot.slane %v1536, 2
      %v1539 = vor.u32 %v1535, %v1538
      %v1540 = vsel %vm1496, %v1530, %v1539
      %v1542 = vshrl.u32 %v1227, 16
      %v1544 = vrot.slane %v1542, 1
      %v1545 = vshll.u32 %v1227, 16
      %v1547 = vrot.slane %v1545, 2
      %v1548 = vor.u32 %v1544, %v1547
      %v1549 = vsel %vm1496, %v1539, %v1548
      %v1551 = vshrl.u32 %v1228, 16
      %v1553 = vrot.slane %v1551, 1
      %v1554 = vshll.u32 %v1228, 16
      %v1556 = vrot.slane %v1554, 2
      %v1557 = vor.u32 %v1553, %v1556
      %v1558 = vsel %vm1496, %v1548, %v1557
      %v1560 = vshrl.u32 %v1229, 16
      %v1562 = vrot.slane %v1560, 1
      %v1563 = vshll.u32 %v1229, 16
      %v1565 = vrot.slane %v1563, 2
      %v1566 = vor.u32 %v1562, %v1565
      %v1567 = vsel %vm1496, %v1557, %v1566
      %v1569 = vshrl.u32 %v1230, 16
      %v1571 = vrot.slane %v1569, 1
      %v1572 = vshll.u32 %v1230, 16
      %v1574 = vrot.slane %v1572, 2
      %v1575 = vor.u32 %v1571, %v1574
      %v1576 = vsel %vm1496, %v1566, %v1575
      %v1578 = vshrl.u32 %v1231, 16
      %v1580 = vrot.slane %v1578, 1
      %v1581 = vshll.u32 %v1231, 16
      %v1583 = vrot.slane %v1581, 2
      %v1584 = vor.u32 %v1580, %v1583
      %v1585 = vsel %vm1496, %v1575, %v1584
      %v1587 = vshrl.u32 %v1232, 16
      %v1589 = vrot.slane %v1587, 1
      %v1590 = vshll.u32 %v1232, 16
      %v1592 = vrot.slane %v1590, 2
      %v1593 = vor.u32 %v1589, %v1592
      %v1594 = vsel %vm1496, %v1584, %v1593
      %v1596 = vshrl.u32 %v1233, 16
      %v1598 = vrot.slane %v1596, 1
      %v1599 = vshll.u32 %v1233, 16
      %v1601 = vrot.slane %v1599, 2
      %v1602 = vor.u32 %v1598, %v1601
      %v1603 = vsel %vm1496, %v1593, %v1602
      %v1605 = vshrl.u32 %v1234, 16
      %v1607 = vrot.slane %v1605, 1
      %v1608 = vshll.u32 %v1234, 16
      %v1610 = vrot.slane %v1608, 2
      %v1611 = vor.u32 %v1607, %v1610
      %v1612 = vsel %vm1496, %v1602, %v1611
      %v1614 = vshrl.u32 %v1235, 16
      %v1616 = vrot.slane %v1614, 1
      %v1617 = vshll.u32 %v1235, 16
      %v1619 = vrot.slane %v1617, 2
      %v1620 = vor.u32 %v1616, %v1619
      %v1621 = vsel %vm1496, %v1611, %v1620
      %v1623 = vshrl.u32 %v1236, 16
      %v1625 = vrot.slane %v1623, 1
      %v1626 = vshll.u32 %v1236, 16
      %v1628 = vrot.slane %v1626, 2
      %v1629 = vor.u32 %v1625, %v1628
      %v1630 = vsel %vm1496, %v1620, %v1629
      %v1632 = vshrl.u32 %v1237, 16
      %v1634 = vrot.slane %v1632, 1
      %v1635 = vshll.u32 %v1237, 16
      %v1637 = vrot.slane %v1635, 2
      %v1638 = vor.u32 %v1634, %v1637
      %v1639 = vsel %vm1496, %v1629, %v1638
      %v1641 = vshrl.u32 %v1238, 16
      %v1643 = vrot.slane %v1641, 1
      %v1644 = vshll.u32 %v1238, 16
      %v1646 = vrot.slane %v1644, 2
      %v1647 = vor.u32 %v1643, %v1646
      %v1648 = vsel %vm1496, %v1638, %v1647
      %v1650 = vshrl.u32 %v1239, 16
      %v1652 = vrot.slane %v1650, 1
      %v1653 = vshll.u32 %v1239, 16
      %v1655 = vrot.slane %v1653, 2
      %v1656 = vor.u32 %v1652, %v1655
      %v1657 = vsel %vm1496, %v1647, %v1656
      %v1659 = vshrl.u32 %v1495, 16
      %v1661 = vrot.slane %v1659, 1
      %v1662 = vshll.u32 %v1495, 16
      %v1664 = vrot.slane %v1662, 2
      %v1665 = vor.u32 %v1661, %v1664
      %v1666 = vsel %vm1496, %v1656, %v1665
      %v1671 = vunpack.c.l.b16 %v1489
      %v1672 = vunpack.c.l.b16 %v1490
      %v1673 = vunpack.c.l.b16 %v1491
      %v1674 = vunpack.c.l.b16 %v1492
      %v1675 = vpack.c.b16 %v1672, %v1671
      %v1676 = vpack.c.b16 %v1674, %v1673
      %v1680 = vsel %vm532, %v1513, 0
      %v1683 = vsel %vm532, %v1522, 0
      %v1686 = vsel %vm532, %v1531, 0
      %v1689 = vsel %vm532, %v1540, 0
      %v1692 = vsel %vm532, %v1549, 0
      %v1695 = vsel %vm532, %v1558, 0
      %v1698 = vsel %vm532, %v1567, 0
      %v1701 = vsel %vm532, %v1576, 0
      %v1704 = vsel %vm532, %v1585, 0
      %v1707 = vsel %vm532, %v1594, 0
      %v1710 = vsel %vm532, %v1603, 0
      %v1713 = vsel %vm532, %v1612, 0
      %v1716 = vsel %vm532, %v1621, 0
      %v1719 = vsel %vm532, %v1630, 0
      %v1722 = vsel %vm532, %v1639, 0
      %v1725 = vsel %vm532, %v1648, 0
      %v1728 = vsel %vm532, %v1657, 0
      %v1731 = vsel %vm532, %v1666, 0
      %v1734 = vsel %vm532, %v1665, 0
      %1736 = vmatpush.bf16.msra.mxu0 0
      %1737 = vmatpush.bf16.msra.mxu0 0
      %1738 = vmatpush.bf16.msra.mxu0 0
      %1739 = vmatpush.bf16.msra.mxu0 0
      %1740 = vmatpush.bf16.msra.mxu0 0
      %1741 = vmatpush.bf16.msra.mxu0 0
      %1742 = vmatpush.bf16.msra.mxu0 %v1676
      %1743 = vmatpush.bf16.msra.mxu0 %v1675
      %1744 = vmatmul.bf16.gmra.mxu0 %v1680
      %v1745 = vpop.f32.mrf.mxu0
      %v1746 = vadd.f32 0.0, %v1745
      %v1747 = vpop.f32.mrf.mxu0
      %v1748 = vadd.f32 0.0, %v1747
      %1749 = vmatmul.bf16.gmra.mxu0 %v1683
      %v1750 = vpop.f32.mrf.mxu0
      %v1751 = vadd.f32 0.0, %v1750
      %v1752 = vpop.f32.mrf.mxu0
      %v1753 = vadd.f32 0.0, %v1752
      %1754 = vmatmul.bf16.gmra.mxu0 %v1686
      %v1755 = vpop.f32.mrf.mxu0
      %v1756 = vadd.f32 0.0, %v1755
      %v1757 = vpop.f32.mrf.mxu0
      %v1758 = vadd.f32 0.0, %v1757
      %1759 = vmatmul.bf16.gmra.mxu0 %v1689
      %v1760 = vpop.f32.mrf.mxu0
      %v1761 = vadd.f32 0.0, %v1760
      %v1762 = vpop.f32.mrf.mxu0
      %v1763 = vadd.f32 0.0, %v1762
      %1764 = vmatmul.bf16.gmra.mxu0 %v1692
      %v1765 = vpop.f32.mrf.mxu0
      %v1766 = vadd.f32 0.0, %v1765
      %v1767 = vpop.f32.mrf.mxu0
      %v1768 = vadd.f32 0.0, %v1767
      %1769 = vmatmul.bf16.gmra.mxu0 %v1695
      %v1770 = vpop.f32.mrf.mxu0
      %v1771 = vadd.f32 0.0, %v1770
      %v1772 = vpop.f32.mrf.mxu0
      %v1773 = vadd.f32 0.0, %v1772
      %1774 = vmatmul.bf16.gmra.mxu0 %v1698
      %v1775 = vpop.f32.mrf.mxu0
      %v1776 = vadd.f32 0.0, %v1775
      %v1777 = vpop.f32.mrf.mxu0
      %v1778 = vadd.f32 0.0, %v1777
      %1779 = vmatmul.bf16.gmra.mxu0 %v1701
      %v1780 = vpop.f32.mrf.mxu0
      %v1781 = vadd.f32 0.0, %v1780
      %v1782 = vpop.f32.mrf.mxu0
      %v1783 = vadd.f32 0.0, %v1782
      %1784 = vmatmul.bf16.gmra.mxu0 %v1704
      %v1785 = vpop.f32.mrf.mxu0
      %v1786 = vadd.f32 0.0, %v1785
      %v1787 = vpop.f32.mrf.mxu0
      %v1788 = vadd.f32 0.0, %v1787
      %1789 = vmatmul.bf16.gmra.mxu0 %v1707
      %v1790 = vpop.f32.mrf.mxu0
      %v1791 = vadd.f32 0.0, %v1790
      %v1792 = vpop.f32.mrf.mxu0
      %v1793 = vadd.f32 0.0, %v1792
      %1794 = vmatmul.bf16.gmra.mxu0 %v1710
      %v1795 = vpop.f32.mrf.mxu0
      %v1796 = vadd.f32 0.0, %v1795
      %v1797 = vpop.f32.mrf.mxu0
      %v1798 = vadd.f32 0.0, %v1797
      %1799 = vmatmul.bf16.gmra.mxu0 %v1713
      %v1800 = vpop.f32.mrf.mxu0
      %v1801 = vadd.f32 0.0, %v1800
      %v1802 = vpop.f32.mrf.mxu0
      %v1803 = vadd.f32 0.0, %v1802
      %1804 = vmatmul.bf16.gmra.mxu0 %v1716
      %v1805 = vpop.f32.mrf.mxu0
      %v1806 = vadd.f32 0.0, %v1805
      %v1807 = vpop.f32.mrf.mxu0
      %v1808 = vadd.f32 0.0, %v1807
      %1809 = vmatmul.bf16.gmra.mxu0 %v1719
      %v1810 = vpop.f32.mrf.mxu0
      %v1811 = vadd.f32 0.0, %v1810
      %v1812 = vpop.f32.mrf.mxu0
      %v1813 = vadd.f32 0.0, %v1812
      %1814 = vmatmul.bf16.gmra.mxu0 %v1722
      %v1815 = vpop.f32.mrf.mxu0
      %v1816 = vadd.f32 0.0, %v1815
      %v1817 = vpop.f32.mrf.mxu0
      %v1818 = vadd.f32 0.0, %v1817
      %1819 = vmatmul.bf16.gmra.mxu0 %v1725
      %v1820 = vpop.f32.mrf.mxu0
      %v1821 = vadd.f32 0.0, %v1820
      %v1822 = vpop.f32.mrf.mxu0
      %v1823 = vadd.f32 0.0, %v1822
      %1824 = vmatmul.bf16.gmra.mxu0 %v1728
      %v1825 = vpop.f32.mrf.mxu0
      %v1826 = vadd.f32 0.0, %v1825
      %v1827 = vpop.f32.mrf.mxu0
      %v1828 = vadd.f32 0.0, %v1827
      %1829 = vmatmul.bf16.gmra.mxu0 %v1731
      %v1830 = vpop.f32.mrf.mxu0
      %v1831 = vadd.f32 0.0, %v1830
      %v1832 = vpop.f32.mrf.mxu0
      %v1833 = vadd.f32 0.0, %v1832
      %1834 = vmatmul.bf16.gmra.mxu0 %v1734
      %v1835 = vpop.f32.mrf.mxu0
      %v1836 = vadd.f32 0.0, %v1835
      %v1837 = vpop.f32.mrf.mxu0
      %1838 = vdwg.mxu0
      %v1839 = vadd.f32 %v1450, %v1746
      %v1840 = vadd.f32 %v1451, %v1748
      %v1841 = vadd.f32 %v1452, %v1751
      %v1842 = vadd.f32 %v1453, %v1753
      %v1843 = vadd.f32 %v1454, %v1756
      %v1844 = vadd.f32 %v1455, %v1758
      %v1845 = vadd.f32 %v1456, %v1761
      %v1846 = vadd.f32 %v1457, %v1763
      %v1847 = vadd.f32 %v1458, %v1766
      %v1848 = vadd.f32 %v1459, %v1768
      %v1849 = vadd.f32 %v1460, %v1771
      %v1850 = vadd.f32 %v1461, %v1773
      %v1851 = vadd.f32 %v1462, %v1776
      %v1852 = vadd.f32 %v1463, %v1778
      %v1853 = vadd.f32 %v1464, %v1781
      %v1854 = vadd.f32 %v1465, %v1783
      %v1855 = vadd.f32 %v1466, %v1786
      %v1856 = vadd.f32 %v1467, %v1788
      %v1857 = vadd.f32 %v1468, %v1791
      %v1858 = vadd.f32 %v1469, %v1793
      %v1859 = vadd.f32 %v1470, %v1796
      %v1860 = vadd.f32 %v1471, %v1798
      %v1861 = vadd.f32 %v1472, %v1801
      %v1862 = vadd.f32 %v1473, %v1803
      %v1863 = vadd.f32 %v1474, %v1806
      %v1864 = vadd.f32 %v1475, %v1808
      %v1865 = vadd.f32 %v1476, %v1811
      %v1866 = vadd.f32 %v1477, %v1813
      %v1867 = vadd.f32 %v1478, %v1816
      %v1868 = vadd.f32 %v1479, %v1818
      %v1869 = vadd.f32 %v1480, %v1821
      %v1870 = vadd.f32 %v1481, %v1823
      %v1871 = vadd.f32 %v1482, %v1826
      %v1872 = vadd.f32 %v1483, %v1828
      %v1873 = vadd.f32 %v1484, %v1831
      %v1874 = vadd.f32 %v1485, %v1833
      %v1875 = vadd.f32 %v1486, %v1836
      %v1876 = vld [vmem:[%s220 + $0x8] sm:$0xc]
      %s1877 = scalar_lea.vmem %s1, 80
      %v1878 = vld [vmem:[%s1877] sm:$0xf]
      %v1879 = vld [vmem:[%s1877 + $0x4] sm:$0xf]
      %v1880 = vld [vmem:[%s1877 + $0x8] sm:$0xf]
      %v1881 = vld [vmem:[%s1877 + $0xc] sm:$0xf]
      %v1883 = vunpack.c.l.b16 %v1876
      %v1884 = vpack.c.b16 %v1186, %v1883
      %vm1885 = vcmask 1045504
      %v1886 = vrot.slane %v1884, 2
      %v1887 = vrot.slane %v1223, 2
      %v1888 = vsel %vm1885, %v1886, %v1887
      %v1889 = vrot.slane %v1224, 2
      %v1890 = vsel %vm1885, %v1887, %v1889
      %v1891 = vrot.slane %v1225, 2
      %v1892 = vsel %vm1885, %v1889, %v1891
      %v1893 = vrot.slane %v1226, 2
      %v1894 = vsel %vm1885, %v1891, %v1893
      %v1895 = vrot.slane %v1227, 2
      %v1896 = vsel %vm1885, %v1893, %v1895
      %v1897 = vrot.slane %v1228, 2
      %v1898 = vsel %vm1885, %v1895, %v1897
      %v1899 = vrot.slane %v1229, 2
      %v1900 = vsel %vm1885, %v1897, %v1899
      %v1901 = vrot.slane %v1230, 2
      %v1902 = vsel %vm1885, %v1899, %v1901
      %v1903 = vrot.slane %v1231, 2
      %v1904 = vsel %vm1885, %v1901, %v1903
      %v1905 = vrot.slane %v1232, 2
      %v1906 = vsel %vm1885, %v1903, %v1905
      %v1907 = vrot.slane %v1233, 2
      %v1908 = vsel %vm1885, %v1905, %v1907
      %v1909 = vrot.slane %v1234, 2
      %v1910 = vsel %vm1885, %v1907, %v1909
      %v1911 = vrot.slane %v1235, 2
      %v1912 = vsel %vm1885, %v1909, %v1911
      %v1913 = vrot.slane %v1236, 2
      %v1914 = vsel %vm1885, %v1911, %v1913
      %v1915 = vrot.slane %v1237, 2
      %v1916 = vsel %vm1885, %v1913, %v1915
      %v1917 = vrot.slane %v1238, 2
      %v1918 = vsel %vm1885, %v1915, %v1917
      %v1919 = vrot.slane %v1239, 2
      %v1920 = vsel %vm1885, %v1917, %v1919
      %v1921 = vrot.slane %v1495, 2
      %v1922 = vsel %vm1885, %v1919, %v1921
      %v1927 = vunpack.c.l.b16 %v1878
      %v1928 = vunpack.c.l.b16 %v1879
      %v1929 = vunpack.c.l.b16 %v1880
      %v1930 = vunpack.c.l.b16 %v1881
      %v1931 = vpack.c.b16 %v1928, %v1927
      %v1932 = vpack.c.b16 %v1930, %v1929
      %v1936 = vsel %vm532, %v1888, 0
      %v1939 = vsel %vm532, %v1890, 0
      %v1942 = vsel %vm532, %v1892, 0
      %v1945 = vsel %vm532, %v1894, 0
      %v1948 = vsel %vm532, %v1896, 0
      %v1951 = vsel %vm532, %v1898, 0
      %v1954 = vsel %vm532, %v1900, 0
      %v1957 = vsel %vm532, %v1902, 0
      %v1960 = vsel %vm532, %v1904, 0
      %v1963 = vsel %vm532, %v1906, 0
      %v1966 = vsel %vm532, %v1908, 0
      %v1969 = vsel %vm532, %v1910, 0
      %v1972 = vsel %vm532, %v1912, 0
      %v1975 = vsel %vm532, %v1914, 0
      %v1978 = vsel %vm532, %v1916, 0
      %v1981 = vsel %vm532, %v1918, 0
      %v1984 = vsel %vm532, %v1920, 0
      %v1987 = vsel %vm532, %v1922, 0
      %v1990 = vsel %vm532, %v1921, 0
      %1992 = vmatpush.bf16.msra.mxu0 0
      %1993 = vmatpush.bf16.msra.mxu0 0
      %1994 = vmatpush.bf16.msra.mxu0 0
      %1995 = vmatpush.bf16.msra.mxu0 0
      %1996 = vmatpush.bf16.msra.mxu0 0
      %1997 = vmatpush.bf16.msra.mxu0 0
      %1998 = vmatpush.bf16.msra.mxu0 %v1932
      %1999 = vmatpush.bf16.msra.mxu0 %v1931
      %2000 = vmatmul.bf16.gmra.mxu0 %v1936
      %v2001 = vpop.f32.mrf.mxu0
      %v2002 = vadd.f32 0.0, %v2001
      %v2003 = vpop.f32.mrf.mxu0
      %v2004 = vadd.f32 0.0, %v2003
      %2005 = vmatmul.bf16.gmra.mxu0 %v1939
      %v2006 = vpop.f32.mrf.mxu0
      %v2007 = vadd.f32 0.0, %v2006
      %v2008 = vpop.f32.mrf.mxu0
      %v2009 = vadd.f32 0.0, %v2008
      %2010 = vmatmul.bf16.gmra.mxu0 %v1942
      %v2011 = vpop.f32.mrf.mxu0
      %v2012 = vadd.f32 0.0, %v2011
      %v2013 = vpop.f32.mrf.mxu0
      %v2014 = vadd.f32 0.0, %v2013
      %2015 = vmatmul.bf16.gmra.mxu0 %v1945
      %v2016 = vpop.f32.mrf.mxu0
      %v2017 = vadd.f32 0.0, %v2016
      %v2018 = vpop.f32.mrf.mxu0
      %v2019 = vadd.f32 0.0, %v2018
      %2020 = vmatmul.bf16.gmra.mxu0 %v1948
      %v2021 = vpop.f32.mrf.mxu0
      %v2022 = vadd.f32 0.0, %v2021
      %v2023 = vpop.f32.mrf.mxu0
      %v2024 = vadd.f32 0.0, %v2023
      %2025 = vmatmul.bf16.gmra.mxu0 %v1951
      %v2026 = vpop.f32.mrf.mxu0
      %v2027 = vadd.f32 0.0, %v2026
      %v2028 = vpop.f32.mrf.mxu0
      %v2029 = vadd.f32 0.0, %v2028
      %2030 = vmatmul.bf16.gmra.mxu0 %v1954
      %v2031 = vpop.f32.mrf.mxu0
      %v2032 = vadd.f32 0.0, %v2031
      %v2033 = vpop.f32.mrf.mxu0
      %v2034 = vadd.f32 0.0, %v2033
      %2035 = vmatmul.bf16.gmra.mxu0 %v1957
      %v2036 = vpop.f32.mrf.mxu0
      %v2037 = vadd.f32 0.0, %v2036
      %v2038 = vpop.f32.mrf.mxu0
      %v2039 = vadd.f32 0.0, %v2038
      %2040 = vmatmul.bf16.gmra.mxu0 %v1960
      %v2041 = vpop.f32.mrf.mxu0
      %v2042 = vadd.f32 0.0, %v2041
      %v2043 = vpop.f32.mrf.mxu0
      %v2044 = vadd.f32 0.0, %v2043
      %2045 = vmatmul.bf16.gmra.mxu0 %v1963
      %v2046 = vpop.f32.mrf.mxu0
      %v2047 = vadd.f32 0.0, %v2046
      %v2048 = vpop.f32.mrf.mxu0
      %v2049 = vadd.f32 0.0, %v2048
      %2050 = vmatmul.bf16.gmra.mxu0 %v1966
      %v2051 = vpop.f32.mrf.mxu0
      %v2052 = vadd.f32 0.0, %v2051
      %v2053 = vpop.f32.mrf.mxu0
      %v2054 = vadd.f32 0.0, %v2053
      %2055 = vmatmul.bf16.gmra.mxu0 %v1969
      %v2056 = vpop.f32.mrf.mxu0
      %v2057 = vadd.f32 0.0, %v2056
      %v2058 = vpop.f32.mrf.mxu0
      %v2059 = vadd.f32 0.0, %v2058
      %2060 = vmatmul.bf16.gmra.mxu0 %v1972
      %v2061 = vpop.f32.mrf.mxu0
      %v2062 = vadd.f32 0.0, %v2061
      %v2063 = vpop.f32.mrf.mxu0
      %v2064 = vadd.f32 0.0, %v2063
      %2065 = vmatmul.bf16.gmra.mxu0 %v1975
      %v2066 = vpop.f32.mrf.mxu0
      %v2067 = vadd.f32 0.0, %v2066
      %v2068 = vpop.f32.mrf.mxu0
      %v2069 = vadd.f32 0.0, %v2068
      %2070 = vmatmul.bf16.gmra.mxu0 %v1978
      %v2071 = vpop.f32.mrf.mxu0
      %v2072 = vadd.f32 0.0, %v2071
      %v2073 = vpop.f32.mrf.mxu0
      %v2074 = vadd.f32 0.0, %v2073
      %2075 = vmatmul.bf16.gmra.mxu0 %v1981
      %v2076 = vpop.f32.mrf.mxu0
      %v2077 = vadd.f32 0.0, %v2076
      %v2078 = vpop.f32.mrf.mxu0
      %v2079 = vadd.f32 0.0, %v2078
      %2080 = vmatmul.bf16.gmra.mxu0 %v1984
      %v2081 = vpop.f32.mrf.mxu0
      %v2082 = vadd.f32 0.0, %v2081
      %v2083 = vpop.f32.mrf.mxu0
      %v2084 = vadd.f32 0.0, %v2083
      %2085 = vmatmul.bf16.gmra.mxu0 %v1987
      %v2086 = vpop.f32.mrf.mxu0
      %v2087 = vadd.f32 0.0, %v2086
      %v2088 = vpop.f32.mrf.mxu0
      %v2089 = vadd.f32 0.0, %v2088
      %2090 = vmatmul.bf16.gmra.mxu0 %v1990
      %v2091 = vpop.f32.mrf.mxu0
      %v2092 = vadd.f32 0.0, %v2091
      %v2093 = vpop.f32.mrf.mxu0
      %2094 = vdwg.mxu0
      %v2095 = vadd.f32 %v1839, %v2002
      %v2096 = vadd.f32 %v1840, %v2004
      %v2097 = vadd.f32 %v1841, %v2007
      %v2098 = vadd.f32 %v1842, %v2009
      %v2099 = vadd.f32 %v1843, %v2012
      %v2100 = vadd.f32 %v1844, %v2014
      %v2101 = vadd.f32 %v1845, %v2017
      %v2102 = vadd.f32 %v1846, %v2019
      %v2103 = vadd.f32 %v1847, %v2022
      %v2104 = vadd.f32 %v1848, %v2024
      %v2105 = vadd.f32 %v1849, %v2027
      %v2106 = vadd.f32 %v1850, %v2029
      %v2107 = vadd.f32 %v1851, %v2032
      %v2108 = vadd.f32 %v1852, %v2034
      %v2109 = vadd.f32 %v1853, %v2037
      %v2110 = vadd.f32 %v1854, %v2039
      %v2111 = vadd.f32 %v1855, %v2042
      %v2112 = vadd.f32 %v1856, %v2044
      %v2113 = vadd.f32 %v1857, %v2047
      %v2114 = vadd.f32 %v1858, %v2049
      %v2115 = vadd.f32 %v1859, %v2052
      %v2116 = vadd.f32 %v1860, %v2054
      %v2117 = vadd.f32 %v1861, %v2057
      %v2118 = vadd.f32 %v1862, %v2059
      %v2119 = vadd.f32 %v1863, %v2062
      %v2120 = vadd.f32 %v1864, %v2064
      %v2121 = vadd.f32 %v1865, %v2067
      %v2122 = vadd.f32 %v1866, %v2069
      %v2123 = vadd.f32 %v1867, %v2072
      %v2124 = vadd.f32 %v1868, %v2074
      %v2125 = vadd.f32 %v1869, %v2077
      %v2126 = vadd.f32 %v1870, %v2079
      %v2127 = vadd.f32 %v1871, %v2082
      %v2128 = vadd.f32 %v1872, %v2084
      %v2129 = vadd.f32 %v1873, %v2087
      %v2130 = vadd.f32 %v1874, %v2089
      %v2131 = vadd.f32 %v1875, %v2092
      %v2132 = vld [vmem:[%s220 + $0x10] sm:$0xc]
      %v2133 = vld [vmem:[%s220 + $0x14] sm:$0xf]
      %v2134 = vld [vmem:[%s220 + $0x18] sm:$0xf]
      %v2135 = vld [vmem:[%s220 + $0x1c] sm:$0xf]
      %v2136 = vld [vmem:[%s220 + $0x20] sm:$0xf]
      %v2137 = vld [vmem:[%s220 + $0x24] sm:$0xf]
      %v2138 = vld [vmem:[%s220 + $0x28] sm:$0xf]
      %v2139 = vld [vmem:[%s220 + $0x2c] sm:$0xf]
      %v2140 = vld [vmem:[%s220 + $0x30] sm:$0xf]
      %v2141 = vld [vmem:[%s220 + $0x34] sm:$0xf]
      %v2142 = vld [vmem:[%s220 + $0x38] sm:$0xf]
      %v2143 = vld [vmem:[%s220 + $0x3c] sm:$0xf]
      %v2144 = vld [vmem:[%s220 + $0x40] sm:$0xf]
      %v2145 = vld [vmem:[%s220 + $0x44] sm:$0xf]
      %v2146 = vld [vmem:[%s220 + $0x48] sm:$0xf]
      %v2147 = vld [vmem:[%s220 + $0x4c] sm:$0xf]
      %v2148 = vld [vmem:[%s220 + $0x50] sm:$0xf]
      %v2149 = vld [vmem:[%s220 + $0x54] sm:$0xf]
      %v2150 = vld [vmem:[%s220 + $0x58] sm:$0xf]
      %v2151 = vld [vmem:[%s220 + $0x5c] sm:$0xf]
      %v2152 = vld [vmem:[%s220 + $0x60] sm:$0xf]
      %v2153 = vld [vmem:[%s220 + $0x64] sm:$0xf]
      %v2154 = vld [vmem:[%s220 + $0x68] sm:$0xf]
      %v2155 = vld [vmem:[%s220 + $0x6c] sm:$0xf]
      %v2156 = vld [vmem:[%s220 + $0x70] sm:$0xf]
      %v2157 = vld [vmem:[%s220 + $0x74] sm:$0xf]
      %v2158 = vld [vmem:[%s220 + $0x78] sm:$0xf]
      %v2159 = vld [vmem:[%s220 + $0x7c] sm:$0xf]
      %v2160 = vld [vmem:[%s220 + $0x80] sm:$0xf]
      %v2161 = vld [vmem:[%s220 + $0x84] sm:$0xf]
      %v2162 = vld [vmem:[%s220 + $0x88] sm:$0xf]
      %v2163 = vld [vmem:[%s220 + $0x8c] sm:$0xf]
      %v2164 = vld [vmem:[%s220 + $0x90] sm:$0xf]
      %v2165 = vld [vmem:[%s220 + $0x94] sm:$0xf]
      %v2166 = vld [vmem:[%s220 + $0x98] sm:$0xf]
      %v2167 = vld [vmem:[%s220 + $0x9c] sm:$0xf]
      %v2168 = vld [vmem:[%s220 + $0xa0] sm:$0x7]
      %s2169 = scalar_lea.vmem %s1, 96
      %v2170 = vld [vmem:[%s2169] sm:$0xf]
      %v2171 = vld [vmem:[%s2169 + $0x4] sm:$0xf]
      %v2172 = vld [vmem:[%s2169 + $0x8] sm:$0xf]
      %v2173 = vld [vmem:[%s2169 + $0xc] sm:$0xf]
      %v2211 = vunpack.c.l.b16 %v2132
      %v2212 = vunpack.c.l.b16 %v2133
      %v2213 = vunpack.c.l.b16 %v2134
      %v2214 = vunpack.c.l.b16 %v2135
      %v2215 = vunpack.c.l.b16 %v2136
      %v2216 = vunpack.c.l.b16 %v2137
      %v2217 = vunpack.c.l.b16 %v2138
      %v2218 = vunpack.c.l.b16 %v2139
      %v2219 = vunpack.c.l.b16 %v2140
      %v2220 = vunpack.c.l.b16 %v2141
      %v2221 = vunpack.c.l.b16 %v2142
      %v2222 = vunpack.c.l.b16 %v2143
      %v2223 = vunpack.c.l.b16 %v2144
      %v2224 = vunpack.c.l.b16 %v2145
      %v2225 = vunpack.c.l.b16 %v2146
      %v2226 = vunpack.c.l.b16 %v2147
      %v2227 = vunpack.c.l.b16 %v2148
      %v2228 = vunpack.c.l.b16 %v2149
      %v2229 = vunpack.c.l.b16 %v2150
      %v2230 = vunpack.c.l.b16 %v2151
      %v2231 = vunpack.c.l.b16 %v2152
      %v2232 = vunpack.c.l.b16 %v2153
      %v2233 = vunpack.c.l.b16 %v2154
      %v2234 = vunpack.c.l.b16 %v2155
      %v2235 = vunpack.c.l.b16 %v2156
      %v2236 = vunpack.c.l.b16 %v2157
      %v2237 = vunpack.c.l.b16 %v2158
      %v2238 = vunpack.c.l.b16 %v2159
      %v2239 = vunpack.c.l.b16 %v2160
      %v2240 = vunpack.c.l.b16 %v2161
      %v2241 = vunpack.c.l.b16 %v2162
      %v2242 = vunpack.c.l.b16 %v2163
      %v2243 = vunpack.c.l.b16 %v2164
      %v2244 = vunpack.c.l.b16 %v2165
      %v2245 = vunpack.c.l.b16 %v2166
      %v2246 = vunpack.c.l.b16 %v2167
      %v2247 = vunpack.c.l.b16 %v2168
      %v2248 = vpack.c.b16 %v2212, %v2211
      %v2249 = vpack.c.b16 %v2214, %v2213
      %v2250 = vpack.c.b16 %v2216, %v2215
      %v2251 = vpack.c.b16 %v2218, %v2217
      %v2252 = vpack.c.b16 %v2220, %v2219
      %v2253 = vpack.c.b16 %v2222, %v2221
      %v2254 = vpack.c.b16 %v2224, %v2223
      %v2255 = vpack.c.b16 %v2226, %v2225
      %v2256 = vpack.c.b16 %v2228, %v2227
      %v2257 = vpack.c.b16 %v2230, %v2229
      %v2258 = vpack.c.b16 %v2232, %v2231
      %v2259 = vpack.c.b16 %v2234, %v2233
      %v2260 = vpack.c.b16 %v2236, %v2235
      %v2261 = vpack.c.b16 %v2238, %v2237
      %v2262 = vpack.c.b16 %v2240, %v2239
      %v2263 = vpack.c.b16 %v2242, %v2241
      %v2264 = vpack.c.b16 %v2244, %v2243
      %v2265 = vpack.c.b16 %v2246, %v2245
      %v2266 = vpack.c.b16 %v2247, %v2247
      %v2267 = vrot.slane %v2248, 2
      %v2268 = vrot.slane %v2249, 2
      %v2269 = vsel %vm1885, %v2267, %v2268
      %v2270 = vrot.slane %v2250, 2
      %v2271 = vsel %vm1885, %v2268, %v2270
      %v2272 = vrot.slane %v2251, 2
      %v2273 = vsel %vm1885, %v2270, %v2272
      %v2274 = vrot.slane %v2252, 2
      %v2275 = vsel %vm1885, %v2272, %v2274
      %v2276 = vrot.slane %v2253, 2
      %v2277 = vsel %vm1885, %v2274, %v2276
      %v2278 = vrot.slane %v2254, 2
      %v2279 = vsel %vm1885, %v2276, %v2278
      %v2280 = vrot.slane %v2255, 2
      %v2281 = vsel %vm1885, %v2278, %v2280
      %v2282 = vrot.slane %v2256, 2
      %v2283 = vsel %vm1885, %v2280, %v2282
      %v2284 = vrot.slane %v2257, 2
      %v2285 = vsel %vm1885, %v2282, %v2284
      %v2286 = vrot.slane %v2258, 2
      %v2287 = vsel %vm1885, %v2284, %v2286
      %v2288 = vrot.slane %v2259, 2
      %v2289 = vsel %vm1885, %v2286, %v2288
      %v2290 = vrot.slane %v2260, 2
      %v2291 = vsel %vm1885, %v2288, %v2290
      %v2292 = vrot.slane %v2261, 2
      %v2293 = vsel %vm1885, %v2290, %v2292
      %v2294 = vrot.slane %v2262, 2
      %v2295 = vsel %vm1885, %v2292, %v2294
      %v2296 = vrot.slane %v2263, 2
      %v2297 = vsel %vm1885, %v2294, %v2296
      %v2298 = vrot.slane %v2264, 2
      %v2299 = vsel %vm1885, %v2296, %v2298
      %v2300 = vrot.slane %v2265, 2
      %v2301 = vsel %vm1885, %v2298, %v2300
      %v2302 = vrot.slane %v2266, 2
      %v2303 = vsel %vm1885, %v2300, %v2302
      %v2308 = vunpack.c.l.b16 %v2170
      %v2309 = vunpack.c.l.b16 %v2171
      %v2310 = vunpack.c.l.b16 %v2172
      %v2311 = vunpack.c.l.b16 %v2173
      %v2312 = vpack.c.b16 %v2309, %v2308
      %v2313 = vpack.c.b16 %v2311, %v2310
      %v2317 = vsel %vm532, %v2269, 0
      %v2320 = vsel %vm532, %v2271, 0
      %v2323 = vsel %vm532, %v2273, 0
      %v2326 = vsel %vm532, %v2275, 0
      %v2329 = vsel %vm532, %v2277, 0
      %v2332 = vsel %vm532, %v2279, 0
      %v2335 = vsel %vm532, %v2281, 0
      %v2338 = vsel %vm532, %v2283, 0
      %v2341 = vsel %vm532, %v2285, 0
      %v2344 = vsel %vm532, %v2287, 0
      %v2347 = vsel %vm532, %v2289, 0
      %v2350 = vsel %vm532, %v2291, 0
      %v2353 = vsel %vm532, %v2293, 0
      %v2356 = vsel %vm532, %v2295, 0
      %v2359 = vsel %vm532, %v2297, 0
      %v2362 = vsel %vm532, %v2299, 0
      %v2365 = vsel %vm532, %v2301, 0
      %v2368 = vsel %vm532, %v2303, 0
      %v2371 = vsel %vm532, %v2302, 0
      %2373 = vmatpush.bf16.msra.mxu0 0
      %2374 = vmatpush.bf16.msra.mxu0 0
      %2375 = vmatpush.bf16.msra.mxu0 0
      %2376 = vmatpush.bf16.msra.mxu0 0
      %2377 = vmatpush.bf16.msra.mxu0 0
      %2378 = vmatpush.bf16.msra.mxu0 0
      %2379 = vmatpush.bf16.msra.mxu0 %v2313
      %2380 = vmatpush.bf16.msra.mxu0 %v2312
      %2381 = vmatmul.bf16.gmra.mxu0 %v2317
      %v2382 = vpop.f32.mrf.mxu0
      %v2383 = vadd.f32 0.0, %v2382
      %v2384 = vpop.f32.mrf.mxu0
      %v2385 = vadd.f32 0.0, %v2384
      %2386 = vmatmul.bf16.gmra.mxu0 %v2320
      %v2387 = vpop.f32.mrf.mxu0
      %v2388 = vadd.f32 0.0, %v2387
      %v2389 = vpop.f32.mrf.mxu0
      %v2390 = vadd.f32 0.0, %v2389
      %2391 = vmatmul.bf16.gmra.mxu0 %v2323
      %v2392 = vpop.f32.mrf.mxu0
      %v2393 = vadd.f32 0.0, %v2392
      %v2394 = vpop.f32.mrf.mxu0
      %v2395 = vadd.f32 0.0, %v2394
      %2396 = vmatmul.bf16.gmra.mxu0 %v2326
      %v2397 = vpop.f32.mrf.mxu0
      %v2398 = vadd.f32 0.0, %v2397
      %v2399 = vpop.f32.mrf.mxu0
      %v2400 = vadd.f32 0.0, %v2399
      %2401 = vmatmul.bf16.gmra.mxu0 %v2329
      %v2402 = vpop.f32.mrf.mxu0
      %v2403 = vadd.f32 0.0, %v2402
      %v2404 = vpop.f32.mrf.mxu0
      %v2405 = vadd.f32 0.0, %v2404
      %2406 = vmatmul.bf16.gmra.mxu0 %v2332
      %v2407 = vpop.f32.mrf.mxu0
      %v2408 = vadd.f32 0.0, %v2407
      %v2409 = vpop.f32.mrf.mxu0
      %v2410 = vadd.f32 0.0, %v2409
      %2411 = vmatmul.bf16.gmra.mxu0 %v2335
      %v2412 = vpop.f32.mrf.mxu0
      %v2413 = vadd.f32 0.0, %v2412
      %v2414 = vpop.f32.mrf.mxu0
      %v2415 = vadd.f32 0.0, %v2414
      %2416 = vmatmul.bf16.gmra.mxu0 %v2338
      %v2417 = vpop.f32.mrf.mxu0
      %v2418 = vadd.f32 0.0, %v2417
      %v2419 = vpop.f32.mrf.mxu0
      %v2420 = vadd.f32 0.0, %v2419
      %2421 = vmatmul.bf16.gmra.mxu0 %v2341
      %v2422 = vpop.f32.mrf.mxu0
      %v2423 = vadd.f32 0.0, %v2422
      %v2424 = vpop.f32.mrf.mxu0
      %v2425 = vadd.f32 0.0, %v2424
      %2426 = vmatmul.bf16.gmra.mxu0 %v2344
      %v2427 = vpop.f32.mrf.mxu0
      %v2428 = vadd.f32 0.0, %v2427
      %v2429 = vpop.f32.mrf.mxu0
      %v2430 = vadd.f32 0.0, %v2429
      %2431 = vmatmul.bf16.gmra.mxu0 %v2347
      %v2432 = vpop.f32.mrf.mxu0
      %v2433 = vadd.f32 0.0, %v2432
      %v2434 = vpop.f32.mrf.mxu0
      %v2435 = vadd.f32 0.0, %v2434
      %2436 = vmatmul.bf16.gmra.mxu0 %v2350
      %v2437 = vpop.f32.mrf.mxu0
      %v2438 = vadd.f32 0.0, %v2437
      %v2439 = vpop.f32.mrf.mxu0
      %v2440 = vadd.f32 0.0, %v2439
      %2441 = vmatmul.bf16.gmra.mxu0 %v2353
      %v2442 = vpop.f32.mrf.mxu0
      %v2443 = vadd.f32 0.0, %v2442
      %v2444 = vpop.f32.mrf.mxu0
      %v2445 = vadd.f32 0.0, %v2444
      %2446 = vmatmul.bf16.gmra.mxu0 %v2356
      %v2447 = vpop.f32.mrf.mxu0
      %v2448 = vadd.f32 0.0, %v2447
      %v2449 = vpop.f32.mrf.mxu0
      %v2450 = vadd.f32 0.0, %v2449
      %2451 = vmatmul.bf16.gmra.mxu0 %v2359
      %v2452 = vpop.f32.mrf.mxu0
      %v2453 = vadd.f32 0.0, %v2452
      %v2454 = vpop.f32.mrf.mxu0
      %v2455 = vadd.f32 0.0, %v2454
      %2456 = vmatmul.bf16.gmra.mxu0 %v2362
      %v2457 = vpop.f32.mrf.mxu0
      %v2458 = vadd.f32 0.0, %v2457
      %v2459 = vpop.f32.mrf.mxu0
      %v2460 = vadd.f32 0.0, %v2459
      %2461 = vmatmul.bf16.gmra.mxu0 %v2365
      %v2462 = vpop.f32.mrf.mxu0
      %v2463 = vadd.f32 0.0, %v2462
      %v2464 = vpop.f32.mrf.mxu0
      %v2465 = vadd.f32 0.0, %v2464
      %2466 = vmatmul.bf16.gmra.mxu0 %v2368
      %v2467 = vpop.f32.mrf.mxu0
      %v2468 = vadd.f32 0.0, %v2467
      %v2469 = vpop.f32.mrf.mxu0
      %v2470 = vadd.f32 0.0, %v2469
      %2471 = vmatmul.bf16.gmra.mxu0 %v2371
      %v2472 = vpop.f32.mrf.mxu0
      %v2473 = vadd.f32 0.0, %v2472
      %v2474 = vpop.f32.mrf.mxu0
      %2475 = vdwg.mxu0
      %v2476 = vadd.f32 %v2095, %v2383
      %v2477 = vadd.f32 %v2096, %v2385
      %v2478 = vadd.f32 %v2097, %v2388
      %v2479 = vadd.f32 %v2098, %v2390
      %v2480 = vadd.f32 %v2099, %v2393
      %v2481 = vadd.f32 %v2100, %v2395
      %v2482 = vadd.f32 %v2101, %v2398
      %v2483 = vadd.f32 %v2102, %v2400
      %v2484 = vadd.f32 %v2103, %v2403
      %v2485 = vadd.f32 %v2104, %v2405
      %v2486 = vadd.f32 %v2105, %v2408
      %v2487 = vadd.f32 %v2106, %v2410
      %v2488 = vadd.f32 %v2107, %v2413
      %v2489 = vadd.f32 %v2108, %v2415
      %v2490 = vadd.f32 %v2109, %v2418
      %v2491 = vadd.f32 %v2110, %v2420
      %v2492 = vadd.f32 %v2111, %v2423
      %v2493 = vadd.f32 %v2112, %v2425
      %v2494 = vadd.f32 %v2113, %v2428
      %v2495 = vadd.f32 %v2114, %v2430
      %v2496 = vadd.f32 %v2115, %v2433
      %v2497 = vadd.f32 %v2116, %v2435
      %v2498 = vadd.f32 %v2117, %v2438
      %v2499 = vadd.f32 %v2118, %v2440
      %v2500 = vadd.f32 %v2119, %v2443
      %v2501 = vadd.f32 %v2120, %v2445
      %v2502 = vadd.f32 %v2121, %v2448
      %v2503 = vadd.f32 %v2122, %v2450
      %v2504 = vadd.f32 %v2123, %v2453
      %v2505 = vadd.f32 %v2124, %v2455
      %v2506 = vadd.f32 %v2125, %v2458
      %v2507 = vadd.f32 %v2126, %v2460
      %v2508 = vadd.f32 %v2127, %v2463
      %v2509 = vadd.f32 %v2128, %v2465
      %v2510 = vadd.f32 %v2129, %v2468
      %v2511 = vadd.f32 %v2130, %v2470
      %v2512 = vadd.f32 %v2131, %v2473
      %v2513 = vld [vmem:[%s220 + $0xa0] sm:$0xf]
      %s2514 = scalar_lea.vmem %s1, 112
      %v2515 = vld [vmem:[%s2514] sm:$0xf]
      %v2516 = vld [vmem:[%s2514 + $0x4] sm:$0xf]
      %v2517 = vld [vmem:[%s2514 + $0x8] sm:$0xf]
      %v2518 = vld [vmem:[%s2514 + $0xc] sm:$0xf]
      %v2520 = vunpack.c.l.b16 %v2513
      %v2521 = vpack.c.b16 %v2520, %v2520
      %vm2522 = vsmask.f32 5376
      %v2524 = vshrl.u32 %v2248, 16
      %v2526 = vrot.slane %v2524, 2
      %v2527 = vshll.u32 %v2248, 16
      %v2529 = vrot.slane %v2527, 3
      %v2530 = vor.u32 %v2526, %v2529
      %v2532 = vshrl.u32 %v2249, 16
      %v2534 = vrot.slane %v2532, 2
      %v2535 = vshll.u32 %v2249, 16
      %v2537 = vrot.slane %v2535, 3
      %v2538 = vor.u32 %v2534, %v2537
      %v2539 = vsel %vm2522, %v2530, %v2538
      %v2541 = vshrl.u32 %v2250, 16
      %v2543 = vrot.slane %v2541, 2
      %v2544 = vshll.u32 %v2250, 16
      %v2546 = vrot.slane %v2544, 3
      %v2547 = vor.u32 %v2543, %v2546
      %v2548 = vsel %vm2522, %v2538, %v2547
      %v2550 = vshrl.u32 %v2251, 16
      %v2552 = vrot.slane %v2550, 2
      %v2553 = vshll.u32 %v2251, 16
      %v2555 = vrot.slane %v2553, 3
      %v2556 = vor.u32 %v2552, %v2555
      %v2557 = vsel %vm2522, %v2547, %v2556
      %v2559 = vshrl.u32 %v2252, 16
      %v2561 = vrot.slane %v2559, 2
      %v2562 = vshll.u32 %v2252, 16
      %v2564 = vrot.slane %v2562, 3
      %v2565 = vor.u32 %v2561, %v2564
      %v2566 = vsel %vm2522, %v2556, %v2565
      %v2568 = vshrl.u32 %v2253, 16
      %v2570 = vrot.slane %v2568, 2
      %v2571 = vshll.u32 %v2253, 16
      %v2573 = vrot.slane %v2571, 3
      %v2574 = vor.u32 %v2570, %v2573
      %v2575 = vsel %vm2522, %v2565, %v2574
      %v2577 = vshrl.u32 %v2254, 16
      %v2579 = vrot.slane %v2577, 2
      %v2580 = vshll.u32 %v2254, 16
      %v2582 = vrot.slane %v2580, 3
      %v2583 = vor.u32 %v2579, %v2582
      %v2584 = vsel %vm2522, %v2574, %v2583
      %v2586 = vshrl.u32 %v2255, 16
      %v2588 = vrot.slane %v2586, 2
      %v2589 = vshll.u32 %v2255, 16
      %v2591 = vrot.slane %v2589, 3
      %v2592 = vor.u32 %v2588, %v2591
      %v2593 = vsel %vm2522, %v2583, %v2592
      %v2595 = vshrl.u32 %v2256, 16
      %v2597 = vrot.slane %v2595, 2
      %v2598 = vshll.u32 %v2256, 16
      %v2600 = vrot.slane %v2598, 3
      %v2601 = vor.u32 %v2597, %v2600
      %v2602 = vsel %vm2522, %v2592, %v2601
      %v2604 = vshrl.u32 %v2257, 16
      %v2606 = vrot.slane %v2604, 2
      %v2607 = vshll.u32 %v2257, 16
      %v2609 = vrot.slane %v2607, 3
      %v2610 = vor.u32 %v2606, %v2609
      %v2611 = vsel %vm2522, %v2601, %v2610
      %v2613 = vshrl.u32 %v2258, 16
      %v2615 = vrot.slane %v2613, 2
      %v2616 = vshll.u32 %v2258, 16
      %v2618 = vrot.slane %v2616, 3
      %v2619 = vor.u32 %v2615, %v2618
      %v2620 = vsel %vm2522, %v2610, %v2619
      %v2622 = vshrl.u32 %v2259, 16
      %v2624 = vrot.slane %v2622, 2
      %v2625 = vshll.u32 %v2259, 16
      %v2627 = vrot.slane %v2625, 3
      %v2628 = vor.u32 %v2624, %v2627
      %v2629 = vsel %vm2522, %v2619, %v2628
      %v2631 = vshrl.u32 %v2260, 16
      %v2633 = vrot.slane %v2631, 2
      %v2634 = vshll.u32 %v2260, 16
      %v2636 = vrot.slane %v2634, 3
      %v2637 = vor.u32 %v2633, %v2636
      %v2638 = vsel %vm2522, %v2628, %v2637
      %v2640 = vshrl.u32 %v2261, 16
      %v2642 = vrot.slane %v2640, 2
      %v2643 = vshll.u32 %v2261, 16
      %v2645 = vrot.slane %v2643, 3
      %v2646 = vor.u32 %v2642, %v2645
      %v2647 = vsel %vm2522, %v2637, %v2646
      %v2649 = vshrl.u32 %v2262, 16
      %v2651 = vrot.slane %v2649, 2
      %v2652 = vshll.u32 %v2262, 16
      %v2654 = vrot.slane %v2652, 3
      %v2655 = vor.u32 %v2651, %v2654
      %v2656 = vsel %vm2522, %v2646, %v2655
      %v2658 = vshrl.u32 %v2263, 16
      %v2660 = vrot.slane %v2658, 2
      %v2661 = vshll.u32 %v2263, 16
      %v2663 = vrot.slane %v2661, 3
      %v2664 = vor.u32 %v2660, %v2663
      %v2665 = vsel %vm2522, %v2655, %v2664
      %v2667 = vshrl.u32 %v2264, 16
      %v2669 = vrot.slane %v2667, 2
      %v2670 = vshll.u32 %v2264, 16
      %v2672 = vrot.slane %v2670, 3
      %v2673 = vor.u32 %v2669, %v2672
      %v2674 = vsel %vm2522, %v2664, %v2673
      %v2676 = vshrl.u32 %v2265, 16
      %v2678 = vrot.slane %v2676, 2
      %v2679 = vshll.u32 %v2265, 16
      %v2681 = vrot.slane %v2679, 3
      %v2682 = vor.u32 %v2678, %v2681
      %v2683 = vsel %vm2522, %v2673, %v2682
      %v2685 = vshrl.u32 %v2521, 16
      %v2687 = vrot.slane %v2685, 2
      %v2688 = vshll.u32 %v2521, 16
      %v2690 = vrot.slane %v2688, 3
      %v2691 = vor.u32 %v2687, %v2690
      %v2692 = vsel %vm2522, %v2682, %v2691
      %v2697 = vunpack.c.l.b16 %v2515
      %v2698 = vunpack.c.l.b16 %v2516
      %v2699 = vunpack.c.l.b16 %v2517
      %v2700 = vunpack.c.l.b16 %v2518
      %v2701 = vpack.c.b16 %v2698, %v2697
      %v2702 = vpack.c.b16 %v2700, %v2699
      %v2706 = vsel %vm532, %v2539, 0
      %v2709 = vsel %vm532, %v2548, 0
      %v2712 = vsel %vm532, %v2557, 0
      %v2715 = vsel %vm532, %v2566, 0
      %v2718 = vsel %vm532, %v2575, 0
      %v2721 = vsel %vm532, %v2584, 0
      %v2724 = vsel %vm532, %v2593, 0
      %v2727 = vsel %vm532, %v2602, 0
      %v2730 = vsel %vm532, %v2611, 0
      %v2733 = vsel %vm532, %v2620, 0
      %v2736 = vsel %vm532, %v2629, 0
      %v2739 = vsel %vm532, %v2638, 0
      %v2742 = vsel %vm532, %v2647, 0
      %v2745 = vsel %vm532, %v2656, 0
      %v2748 = vsel %vm532, %v2665, 0
      %v2751 = vsel %vm532, %v2674, 0
      %v2754 = vsel %vm532, %v2683, 0
      %v2757 = vsel %vm532, %v2692, 0
      %v2760 = vsel %vm532, %v2691, 0
      %2762 = vmatpush.bf16.msra.mxu0 0
      %2763 = vmatpush.bf16.msra.mxu0 0
      %2764 = vmatpush.bf16.msra.mxu0 0
      %2765 = vmatpush.bf16.msra.mxu0 0
      %2766 = vmatpush.bf16.msra.mxu0 0
      %2767 = vmatpush.bf16.msra.mxu0 0
      %2768 = vmatpush.bf16.msra.mxu0 %v2702
      %2769 = vmatpush.bf16.msra.mxu0 %v2701
      %2770 = vmatmul.bf16.gmra.mxu0 %v2706
      %v2771 = vpop.f32.mrf.mxu0
      %v2772 = vadd.f32 0.0, %v2771
      %v2773 = vpop.f32.mrf.mxu0
      %v2774 = vadd.f32 0.0, %v2773
      %2775 = vmatmul.bf16.gmra.mxu0 %v2709
      %v2776 = vpop.f32.mrf.mxu0
      %v2777 = vadd.f32 0.0, %v2776
      %v2778 = vpop.f32.mrf.mxu0
      %v2779 = vadd.f32 0.0, %v2778
      %2780 = vmatmul.bf16.gmra.mxu0 %v2712
      %v2781 = vpop.f32.mrf.mxu0
      %v2782 = vadd.f32 0.0, %v2781
      %v2783 = vpop.f32.mrf.mxu0
      %v2784 = vadd.f32 0.0, %v2783
      %2785 = vmatmul.bf16.gmra.mxu0 %v2715
      %v2786 = vpop.f32.mrf.mxu0
      %v2787 = vadd.f32 0.0, %v2786
      %v2788 = vpop.f32.mrf.mxu0
      %v2789 = vadd.f32 0.0, %v2788
      %2790 = vmatmul.bf16.gmra.mxu0 %v2718
      %v2791 = vpop.f32.mrf.mxu0
      %v2792 = vadd.f32 0.0, %v2791
      %v2793 = vpop.f32.mrf.mxu0
      %v2794 = vadd.f32 0.0, %v2793
      %2795 = vmatmul.bf16.gmra.mxu0 %v2721
      %v2796 = vpop.f32.mrf.mxu0
      %v2797 = vadd.f32 0.0, %v2796
      %v2798 = vpop.f32.mrf.mxu0
      %v2799 = vadd.f32 0.0, %v2798
      %2800 = vmatmul.bf16.gmra.mxu0 %v2724
      %v2801 = vpop.f32.mrf.mxu0
      %v2802 = vadd.f32 0.0, %v2801
      %v2803 = vpop.f32.mrf.mxu0
      %v2804 = vadd.f32 0.0, %v2803
      %2805 = vmatmul.bf16.gmra.mxu0 %v2727
      %v2806 = vpop.f32.mrf.mxu0
      %v2807 = vadd.f32 0.0, %v2806
      %v2808 = vpop.f32.mrf.mxu0
      %v2809 = vadd.f32 0.0, %v2808
      %2810 = vmatmul.bf16.gmra.mxu0 %v2730
      %v2811 = vpop.f32.mrf.mxu0
      %v2812 = vadd.f32 0.0, %v2811
      %v2813 = vpop.f32.mrf.mxu0
      %v2814 = vadd.f32 0.0, %v2813
      %2815 = vmatmul.bf16.gmra.mxu0 %v2733
      %v2816 = vpop.f32.mrf.mxu0
      %v2817 = vadd.f32 0.0, %v2816
      %v2818 = vpop.f32.mrf.mxu0
      %v2819 = vadd.f32 0.0, %v2818
      %2820 = vmatmul.bf16.gmra.mxu0 %v2736
      %v2821 = vpop.f32.mrf.mxu0
      %v2822 = vadd.f32 0.0, %v2821
      %v2823 = vpop.f32.mrf.mxu0
      %v2824 = vadd.f32 0.0, %v2823
      %2825 = vmatmul.bf16.gmra.mxu0 %v2739
      %v2826 = vpop.f32.mrf.mxu0
      %v2827 = vadd.f32 0.0, %v2826
      %v2828 = vpop.f32.mrf.mxu0
      %v2829 = vadd.f32 0.0, %v2828
      %2830 = vmatmul.bf16.gmra.mxu0 %v2742
      %v2831 = vpop.f32.mrf.mxu0
      %v2832 = vadd.f32 0.0, %v2831
      %v2833 = vpop.f32.mrf.mxu0
      %v2834 = vadd.f32 0.0, %v2833
      %2835 = vmatmul.bf16.gmra.mxu0 %v2745
      %v2836 = vpop.f32.mrf.mxu0
      %v2837 = vadd.f32 0.0, %v2836
      %v2838 = vpop.f32.mrf.mxu0
      %v2839 = vadd.f32 0.0, %v2838
      %2840 = vmatmul.bf16.gmra.mxu0 %v2748
      %v2841 = vpop.f32.mrf.mxu0
      %v2842 = vadd.f32 0.0, %v2841
      %v2843 = vpop.f32.mrf.mxu0
      %v2844 = vadd.f32 0.0, %v2843
      %2845 = vmatmul.bf16.gmra.mxu0 %v2751
      %v2846 = vpop.f32.mrf.mxu0
      %v2847 = vadd.f32 0.0, %v2846
      %v2848 = vpop.f32.mrf.mxu0
      %v2849 = vadd.f32 0.0, %v2848
      %2850 = vmatmul.bf16.gmra.mxu0 %v2754
      %v2851 = vpop.f32.mrf.mxu0
      %v2852 = vadd.f32 0.0, %v2851
      %v2853 = vpop.f32.mrf.mxu0
      %v2854 = vadd.f32 0.0, %v2853
      %2855 = vmatmul.bf16.gmra.mxu0 %v2757
      %v2856 = vpop.f32.mrf.mxu0
      %v2857 = vadd.f32 0.0, %v2856
      %v2858 = vpop.f32.mrf.mxu0
      %v2859 = vadd.f32 0.0, %v2858
      %2860 = vmatmul.bf16.gmra.mxu0 %v2760
      %v2861 = vpop.f32.mrf.mxu0
      %v2862 = vadd.f32 0.0, %v2861
      %v2863 = vpop.f32.mrf.mxu0
      %2864 = vdwg.mxu0
      %v2865 = vadd.f32 %v2476, %v2772
      %v2866 = vadd.f32 %v2477, %v2774
      %v2867 = vadd.f32 %v2478, %v2777
      %v2868 = vadd.f32 %v2479, %v2779
      %v2869 = vadd.f32 %v2480, %v2782
      %v2870 = vadd.f32 %v2481, %v2784
      %v2871 = vadd.f32 %v2482, %v2787
      %v2872 = vadd.f32 %v2483, %v2789
      %v2873 = vadd.f32 %v2484, %v2792
      %v2874 = vadd.f32 %v2485, %v2794
      %v2875 = vadd.f32 %v2486, %v2797
      %v2876 = vadd.f32 %v2487, %v2799
      %v2877 = vadd.f32 %v2488, %v2802
      %v2878 = vadd.f32 %v2489, %v2804
      %v2879 = vadd.f32 %v2490, %v2807
      %v2880 = vadd.f32 %v2491, %v2809
      %v2881 = vadd.f32 %v2492, %v2812
      %v2882 = vadd.f32 %v2493, %v2814
      %v2883 = vadd.f32 %v2494, %v2817
      %v2884 = vadd.f32 %v2495, %v2819
      %v2885 = vadd.f32 %v2496, %v2822
      %v2886 = vadd.f32 %v2497, %v2824
      %v2887 = vadd.f32 %v2498, %v2827
      %v2888 = vadd.f32 %v2499, %v2829
      %v2889 = vadd.f32 %v2500, %v2832
      %v2890 = vadd.f32 %v2501, %v2834
      %v2891 = vadd.f32 %v2502, %v2837
      %v2892 = vadd.f32 %v2503, %v2839
      %v2893 = vadd.f32 %v2504, %v2842
      %v2894 = vadd.f32 %v2505, %v2844
      %v2895 = vadd.f32 %v2506, %v2847
      %v2896 = vadd.f32 %v2507, %v2849
      %v2897 = vadd.f32 %v2508, %v2852
      %v2898 = vadd.f32 %v2509, %v2854
      %v2899 = vadd.f32 %v2510, %v2857
      %v2900 = vadd.f32 %v2511, %v2859
      %v2901 = vadd.f32 %v2512, %v2862
      %v2902 = vld [vmem:[%s220 + $0x10] sm:$0x8]
      %s2903 = scalar_lea.vmem %s1, 128
      %v2904 = vld [vmem:[%s2903] sm:$0xf]
      %v2905 = vld [vmem:[%s2903 + $0x4] sm:$0xf]
      %v2906 = vld [vmem:[%s2903 + $0x8] sm:$0xf]
      %v2907 = vld [vmem:[%s2903 + $0xc] sm:$0xf]
      %v2909 = vunpack.c.l.b16 %v2902
      %v2910 = vpack.c.b16 %v2212, %v2909
      %vm2911 = vcmask 1044480
      %v2912 = vrot.slane %v2910, 3
      %v2913 = vrot.slane %v2249, 3
      %v2914 = vsel %vm2911, %v2912, %v2913
      %v2915 = vrot.slane %v2250, 3
      %v2916 = vsel %vm2911, %v2913, %v2915
      %v2917 = vrot.slane %v2251, 3
      %v2918 = vsel %vm2911, %v2915, %v2917
      %v2919 = vrot.slane %v2252, 3
      %v2920 = vsel %vm2911, %v2917, %v2919
      %v2921 = vrot.slane %v2253, 3
      %v2922 = vsel %vm2911, %v2919, %v2921
      %v2923 = vrot.slane %v2254, 3
      %v2924 = vsel %vm2911, %v2921, %v2923
      %v2925 = vrot.slane %v2255, 3
      %v2926 = vsel %vm2911, %v2923, %v2925
      %v2927 = vrot.slane %v2256, 3
      %v2928 = vsel %vm2911, %v2925, %v2927
      %v2929 = vrot.slane %v2257, 3
      %v2930 = vsel %vm2911, %v2927, %v2929
      %v2931 = vrot.slane %v2258, 3
      %v2932 = vsel %vm2911, %v2929, %v2931
      %v2933 = vrot.slane %v2259, 3
      %v2934 = vsel %vm2911, %v2931, %v2933
      %v2935 = vrot.slane %v2260, 3
      %v2936 = vsel %vm2911, %v2933, %v2935
      %v2937 = vrot.slane %v2261, 3
      %v2938 = vsel %vm2911, %v2935, %v2937
      %v2939 = vrot.slane %v2262, 3
      %v2940 = vsel %vm2911, %v2937, %v2939
      %v2941 = vrot.slane %v2263, 3
      %v2942 = vsel %vm2911, %v2939, %v2941
      %v2943 = vrot.slane %v2264, 3
      %v2944 = vsel %vm2911, %v2941, %v2943
      %v2945 = vrot.slane %v2265, 3
      %v2946 = vsel %vm2911, %v2943, %v2945
      %v2947 = vrot.slane %v2521, 3
      %v2948 = vsel %vm2911, %v2945, %v2947
      %v2953 = vunpack.c.l.b16 %v2904
      %v2954 = vunpack.c.l.b16 %v2905
      %v2955 = vunpack.c.l.b16 %v2906
      %v2956 = vunpack.c.l.b16 %v2907
      %v2957 = vpack.c.b16 %v2954, %v2953
      %v2958 = vpack.c.b16 %v2956, %v2955
      %v2962 = vsel %vm532, %v2914, 0
      %v2965 = vsel %vm532, %v2916, 0
      %v2968 = vsel %vm532, %v2918, 0
      %v2971 = vsel %vm532, %v2920, 0
      %v2974 = vsel %vm532, %v2922, 0
      %v2977 = vsel %vm532, %v2924, 0
      %v2980 = vsel %vm532, %v2926, 0
      %v2983 = vsel %vm532, %v2928, 0
      %v2986 = vsel %vm532, %v2930, 0
      %v2989 = vsel %vm532, %v2932, 0
      %v2992 = vsel %vm532, %v2934, 0
      %v2995 = vsel %vm532, %v2936, 0
      %v2998 = vsel %vm532, %v2938, 0
      %v3001 = vsel %vm532, %v2940, 0
      %v3004 = vsel %vm532, %v2942, 0
      %v3007 = vsel %vm532, %v2944, 0
      %v3010 = vsel %vm532, %v2946, 0
      %v3013 = vsel %vm532, %v2948, 0
      %v3016 = vsel %vm532, %v2947, 0
      %3018 = vmatpush.bf16.msra.mxu0 0
      %3019 = vmatpush.bf16.msra.mxu0 0
      %3020 = vmatpush.bf16.msra.mxu0 0
      %3021 = vmatpush.bf16.msra.mxu0 0
      %3022 = vmatpush.bf16.msra.mxu0 0
      %3023 = vmatpush.bf16.msra.mxu0 0
      %3024 = vmatpush.bf16.msra.mxu0 %v2958
      %3025 = vmatpush.bf16.msra.mxu0 %v2957
      %3026 = vmatmul.bf16.gmra.mxu0 %v2962
      %v3027 = vpop.f32.mrf.mxu0
      %v3028 = vadd.f32 0.0, %v3027
      %v3029 = vpop.f32.mrf.mxu0
      %v3030 = vadd.f32 0.0, %v3029
      %3031 = vmatmul.bf16.gmra.mxu0 %v2965
      %v3032 = vpop.f32.mrf.mxu0
      %v3033 = vadd.f32 0.0, %v3032
      %v3034 = vpop.f32.mrf.mxu0
      %v3035 = vadd.f32 0.0, %v3034
      %3036 = vmatmul.bf16.gmra.mxu0 %v2968
      %v3037 = vpop.f32.mrf.mxu0
      %v3038 = vadd.f32 0.0, %v3037
      %v3039 = vpop.f32.mrf.mxu0
      %v3040 = vadd.f32 0.0, %v3039
      %3041 = vmatmul.bf16.gmra.mxu0 %v2971
      %v3042 = vpop.f32.mrf.mxu0
      %v3043 = vadd.f32 0.0, %v3042
      %v3044 = vpop.f32.mrf.mxu0
      %v3045 = vadd.f32 0.0, %v3044
      %3046 = vmatmul.bf16.gmra.mxu0 %v2974
      %v3047 = vpop.f32.mrf.mxu0
      %v3048 = vadd.f32 0.0, %v3047
      %v3049 = vpop.f32.mrf.mxu0
      %v3050 = vadd.f32 0.0, %v3049
      %3051 = vmatmul.bf16.gmra.mxu0 %v2977
      %v3052 = vpop.f32.mrf.mxu0
      %v3053 = vadd.f32 0.0, %v3052
      %v3054 = vpop.f32.mrf.mxu0
      %v3055 = vadd.f32 0.0, %v3054
      %3056 = vmatmul.bf16.gmra.mxu0 %v2980
      %v3057 = vpop.f32.mrf.mxu0
      %v3058 = vadd.f32 0.0, %v3057
      %v3059 = vpop.f32.mrf.mxu0
      %v3060 = vadd.f32 0.0, %v3059
      %3061 = vmatmul.bf16.gmra.mxu0 %v2983
      %v3062 = vpop.f32.mrf.mxu0
      %v3063 = vadd.f32 0.0, %v3062
      %v3064 = vpop.f32.mrf.mxu0
      %v3065 = vadd.f32 0.0, %v3064
      %3066 = vmatmul.bf16.gmra.mxu0 %v2986
      %v3067 = vpop.f32.mrf.mxu0
      %v3068 = vadd.f32 0.0, %v3067
      %v3069 = vpop.f32.mrf.mxu0
      %v3070 = vadd.f32 0.0, %v3069
      %3071 = vmatmul.bf16.gmra.mxu0 %v2989
      %v3072 = vpop.f32.mrf.mxu0
      %v3073 = vadd.f32 0.0, %v3072
      %v3074 = vpop.f32.mrf.mxu0
      %v3075 = vadd.f32 0.0, %v3074
      %3076 = vmatmul.bf16.gmra.mxu0 %v2992
      %v3077 = vpop.f32.mrf.mxu0
      %v3078 = vadd.f32 0.0, %v3077
      %v3079 = vpop.f32.mrf.mxu0
      %v3080 = vadd.f32 0.0, %v3079
      %3081 = vmatmul.bf16.gmra.mxu0 %v2995
      %v3082 = vpop.f32.mrf.mxu0
      %v3083 = vadd.f32 0.0, %v3082
      %v3084 = vpop.f32.mrf.mxu0
      %v3085 = vadd.f32 0.0, %v3084
      %3086 = vmatmul.bf16.gmra.mxu0 %v2998
      %v3087 = vpop.f32.mrf.mxu0
      %v3088 = vadd.f32 0.0, %v3087
      %v3089 = vpop.f32.mrf.mxu0
      %v3090 = vadd.f32 0.0, %v3089
      %3091 = vmatmul.bf16.gmra.mxu0 %v3001
      %v3092 = vpop.f32.mrf.mxu0
      %v3093 = vadd.f32 0.0, %v3092
      %v3094 = vpop.f32.mrf.mxu0
      %v3095 = vadd.f32 0.0, %v3094
      %3096 = vmatmul.bf16.gmra.mxu0 %v3004
      %v3097 = vpop.f32.mrf.mxu0
      %v3098 = vadd.f32 0.0, %v3097
      %v3099 = vpop.f32.mrf.mxu0
      %v3100 = vadd.f32 0.0, %v3099
      %3101 = vmatmul.bf16.gmra.mxu0 %v3007
      %v3102 = vpop.f32.mrf.mxu0
      %v3103 = vadd.f32 0.0, %v3102
      %v3104 = vpop.f32.mrf.mxu0
      %v3105 = vadd.f32 0.0, %v3104
      %3106 = vmatmul.bf16.gmra.mxu0 %v3010
      %v3107 = vpop.f32.mrf.mxu0
      %v3108 = vadd.f32 0.0, %v3107
      %v3109 = vpop.f32.mrf.mxu0
      %v3110 = vadd.f32 0.0, %v3109
      %3111 = vmatmul.bf16.gmra.mxu0 %v3013
      %v3112 = vpop.f32.mrf.mxu0
      %v3113 = vadd.f32 0.0, %v3112
      %v3114 = vpop.f32.mrf.mxu0
      %v3115 = vadd.f32 0.0, %v3114
      %3116 = vmatmul.bf16.gmra.mxu0 %v3016
      %v3117 = vpop.f32.mrf.mxu0
      %v3118 = vadd.f32 0.0, %v3117
      %v3119 = vpop.f32.mrf.mxu0
      %3120 = vdwg.mxu0
      %v3121 = vadd.f32 %v2865, %v3028
      %v3122 = vadd.f32 %v2866, %v3030
      %v3123 = vadd.f32 %v2867, %v3033
      %v3124 = vadd.f32 %v2868, %v3035
      %v3125 = vadd.f32 %v2869, %v3038
      %v3126 = vadd.f32 %v2870, %v3040
      %v3127 = vadd.f32 %v2871, %v3043
      %v3128 = vadd.f32 %v2872, %v3045
      %v3129 = vadd.f32 %v2873, %v3048
      %v3130 = vadd.f32 %v2874, %v3050
      %v3131 = vadd.f32 %v2875, %v3053
      %v3132 = vadd.f32 %v2876, %v3055
      %v3133 = vadd.f32 %v2877, %v3058
      %v3134 = vadd.f32 %v2878, %v3060
      %v3135 = vadd.f32 %v2879, %v3063
      %v3136 = vadd.f32 %v2880, %v3065
      %v3137 = vadd.f32 %v2881, %v3068
      %v3138 = vadd.f32 %v2882, %v3070
      %v3139 = vadd.f32 %v2883, %v3073
      %v3140 = vadd.f32 %v2884, %v3075
      %v3141 = vadd.f32 %v2885, %v3078
      %v3142 = vadd.f32 %v2886, %v3080
      %v3143 = vadd.f32 %v2887, %v3083
      %v3144 = vadd.f32 %v2888, %v3085
      %v3145 = vadd.f32 %v2889, %v3088
      %v3146 = vadd.f32 %v2890, %v3090
      %v3147 = vadd.f32 %v2891, %v3093
      %v3148 = vadd.f32 %v2892, %v3095
      %v3149 = vadd.f32 %v2893, %v3098
      %v3150 = vadd.f32 %v2894, %v3100
      %v3151 = vadd.f32 %v2895, %v3103
      %v3152 = vadd.f32 %v2896, %v3105
      %v3153 = vadd.f32 %v2897, %v3108
      %v3154 = vadd.f32 %v2898, %v3110
      %v3155 = vadd.f32 %v2899, %v3113
      %v3156 = vadd.f32 %v2900, %v3115
      %v3157 = vadd.f32 %v2901, %v3118
      %v3158 = vld [vmem:[%s2] sm:$0x1]
      %v3160 = vperm.slane %v3158, 0
      %v3162 = vadd.f32 %v3121, %v3160
      %v3163 = vadd.f32 %v3122, %v3160
      %v3164 = vadd.f32 %v3123, %v3160
      %v3165 = vadd.f32 %v3124, %v3160
      %v3166 = vadd.f32 %v3125, %v3160
      %v3167 = vadd.f32 %v3126, %v3160
      %v3168 = vadd.f32 %v3127, %v3160
      %v3169 = vadd.f32 %v3128, %v3160
      %v3170 = vadd.f32 %v3129, %v3160
      %v3171 = vadd.f32 %v3130, %v3160
      %v3172 = vadd.f32 %v3131, %v3160
      %v3173 = vadd.f32 %v3132, %v3160
      %v3174 = vadd.f32 %v3133, %v3160
      %v3175 = vadd.f32 %v3134, %v3160
      %v3176 = vadd.f32 %v3135, %v3160
      %v3177 = vadd.f32 %v3136, %v3160
      %v3178 = vadd.f32 %v3137, %v3160
      %v3179 = vadd.f32 %v3138, %v3160
      %v3180 = vadd.f32 %v3139, %v3160
      %v3181 = vadd.f32 %v3140, %v3160
      %v3182 = vadd.f32 %v3141, %v3160
      %v3183 = vadd.f32 %v3142, %v3160
      %v3184 = vadd.f32 %v3143, %v3160
      %v3185 = vadd.f32 %v3144, %v3160
      %v3186 = vadd.f32 %v3145, %v3160
      %v3187 = vadd.f32 %v3146, %v3160
      %v3188 = vadd.f32 %v3147, %v3160
      %v3189 = vadd.f32 %v3148, %v3160
      %v3190 = vadd.f32 %v3149, %v3160
      %v3191 = vadd.f32 %v3150, %v3160
      %v3192 = vadd.f32 %v3151, %v3160
      %v3193 = vadd.f32 %v3152, %v3160
      %v3194 = vadd.f32 %v3153, %v3160
      %v3195 = vadd.f32 %v3154, %v3160
      %v3196 = vadd.f32 %v3155, %v3160
      %v3197 = vadd.f32 %v3156, %v3160
      %v3198 = vadd.f32 %v3157, %v3160
      %v3199 = vmax.f32 %v3162, 0.0
      %v3200 = vmax.f32 %v3163, 0.0
      %v3201 = vmax.f32 %v3164, 0.0
      %v3202 = vmax.f32 %v3165, 0.0
      %v3203 = vmax.f32 %v3166, 0.0
      %v3204 = vmax.f32 %v3167, 0.0
      %v3205 = vmax.f32 %v3168, 0.0
      %v3206 = vmax.f32 %v3169, 0.0
      %v3207 = vmax.f32 %v3170, 0.0
      %v3208 = vmax.f32 %v3171, 0.0
      %v3209 = vmax.f32 %v3172, 0.0
      %v3210 = vmax.f32 %v3173, 0.0
      %v3211 = vmax.f32 %v3174, 0.0
      %v3212 = vmax.f32 %v3175, 0.0
      %v3213 = vmax.f32 %v3176, 0.0
      %v3214 = vmax.f32 %v3177, 0.0
      %v3215 = vmax.f32 %v3178, 0.0
      %v3216 = vmax.f32 %v3179, 0.0
      %v3217 = vmax.f32 %v3180, 0.0
      %v3218 = vmax.f32 %v3181, 0.0
      %v3219 = vmax.f32 %v3182, 0.0
      %v3220 = vmax.f32 %v3183, 0.0
      %v3221 = vmax.f32 %v3184, 0.0
      %v3222 = vmax.f32 %v3185, 0.0
      %v3223 = vmax.f32 %v3186, 0.0
      %v3224 = vmax.f32 %v3187, 0.0
      %v3225 = vmax.f32 %v3188, 0.0
      %v3226 = vmax.f32 %v3189, 0.0
      %v3227 = vmax.f32 %v3190, 0.0
      %v3228 = vmax.f32 %v3191, 0.0
      %v3229 = vmax.f32 %v3192, 0.0
      %v3230 = vmax.f32 %v3193, 0.0
      %v3231 = vmax.f32 %v3194, 0.0
      %v3232 = vmax.f32 %v3195, 0.0
      %v3233 = vmax.f32 %v3196, 0.0
      %v3234 = vmax.f32 %v3197, 0.0
      %v3235 = vmax.f32 %v3198, 0.0
      %v3236 = vpack.c.bf16 %v3200, %v3199
      %v3237 = vpack.c.bf16 %v3202, %v3201
      %v3238 = vpack.c.bf16 %v3204, %v3203
      %v3239 = vpack.c.bf16 %v3206, %v3205
      %v3240 = vpack.c.bf16 %v3208, %v3207
      %v3241 = vpack.c.bf16 %v3210, %v3209
      %v3242 = vpack.c.bf16 %v3212, %v3211
      %v3243 = vpack.c.bf16 %v3214, %v3213
      %v3244 = vpack.c.bf16 %v3216, %v3215
      %v3245 = vpack.c.bf16 %v3218, %v3217
      %v3246 = vpack.c.bf16 %v3220, %v3219
      %v3247 = vpack.c.bf16 %v3222, %v3221
      %v3248 = vpack.c.bf16 %v3224, %v3223
      %v3249 = vpack.c.bf16 %v3226, %v3225
      %v3250 = vpack.c.bf16 %v3228, %v3227
      %v3251 = vpack.c.bf16 %v3230, %v3229
      %v3252 = vpack.c.bf16 %v3232, %v3231
      %v3253 = vpack.c.bf16 %v3234, %v3233
      %v3254 = vpack.c.bf16 %v3235, %v3235
      %v3255 = vld [vmem:[%s3] sm:$0xf]
      %v3256 = vld [vmem:[%s3 + $0x4] sm:$0x3]
      %v3257 = vld [vmem:[%s4] sm:$0xff]
      %v3258 = vld [vmem:[%s4 + $0x8] sm:$0xf]
      %3260 = vset.pattern.permute.xlu0 0
      %3261 = vperm.xlu0 %3260, %v3257
      %v3262 = vpop.permute.xlu0 %3261
      %3265 = vset.pattern.permute.xlu0 0
      %3266 = vperm.xlu0 %3265, %v3258
      %v3267 = vpop.permute.xlu0 %3266
      %v3271 = vunpack.c.l.b16 %v3255
      %v3272 = vunpack.c.l.b16 %v3256
      %v3273 = vpack.c.b16 %v3272, %v3271
      %v3275 = vsel %vm532, %v3273, 0
      %v3278 = vsel %vm532, %v3236, 0
      %v3281 = vsel %vm532, %v3237, 0
      %v3284 = vsel %vm532, %v3238, 0
      %v3287 = vsel %vm532, %v3239, 0
      %v3290 = vsel %vm532, %v3240, 0
      %v3293 = vsel %vm532, %v3241, 0
      %v3296 = vsel %vm532, %v3242, 0
      %v3299 = vsel %vm532, %v3243, 0
      %v3302 = vsel %vm532, %v3244, 0
      %v3305 = vsel %vm532, %v3245, 0
      %v3308 = vsel %vm532, %v3246, 0
      %v3311 = vsel %vm532, %v3247, 0
      %v3314 = vsel %vm532, %v3248, 0
      %v3317 = vsel %vm532, %v3249, 0
      %v3320 = vsel %vm532, %v3250, 0
      %v3323 = vsel %vm532, %v3251, 0
      %v3326 = vsel %vm532, %v3252, 0
      %v3329 = vsel %vm532, %v3253, 0
      %v3332 = vsel %vm532, %v3254, 0
      %3334 = vmatpush.bf16.xpose.msra.mxu0 %v3299
      %3335 = vmatpush.bf16.xpose.msra.mxu0 %v3296
      %3336 = vmatpush.bf16.xpose.msra.mxu0 %v3293
      %3337 = vmatpush.bf16.xpose.msra.mxu0 %v3290
      %3338 = vmatpush.bf16.xpose.msra.mxu0 %v3287
      %3339 = vmatpush.bf16.xpose.msra.mxu0 %v3284
      %3340 = vmatpush.bf16.xpose.msra.mxu0 %v3281
      %3341 = vmatpush.bf16.xpose.msra.mxu0 %v3278
      %3342 = vmatmul.bf16.gmra.mxu0 %v3275
      %v3343 = vpop.f32.mrf.mxu0
      %v3344 = vadd.f32 %v3262, %v3343
      %v3345 = vpop.f32.mrf.mxu0
      %v3346 = vadd.f32 %v3267, %v3345
      %3347 = vdwg.mxu0
      %3348 = vmatpush.bf16.xpose.msra.mxu0 %v3323
      %3349 = vmatpush.bf16.xpose.msra.mxu0 %v3320
      %3350 = vmatpush.bf16.xpose.msra.mxu0 %v3317
      %3351 = vmatpush.bf16.xpose.msra.mxu0 %v3314
      %3352 = vmatpush.bf16.xpose.msra.mxu0 %v3311
      %3353 = vmatpush.bf16.xpose.msra.mxu0 %v3308
      %3354 = vmatpush.bf16.xpose.msra.mxu0 %v3305
      %3355 = vmatpush.bf16.xpose.msra.mxu0 %v3302
      %3356 = vmatmul.bf16.gmra.mxu0 %v3275
      %v3357 = vpop.f32.mrf.mxu0
      %v3358 = vadd.f32 %v3262, %v3357
      %v3359 = vpop.f32.mrf.mxu0
      %v3360 = vadd.f32 %v3267, %v3359
      %3361 = vdwg.mxu0
      %3362 = vmatpush.bf16.xpose.msra.mxu0 0
      %3363 = vmatpush.bf16.xpose.msra.mxu0 0
      %3364 = vmatpush.bf16.xpose.msra.mxu0 0
      %3365 = vmatpush.bf16.xpose.msra.mxu0 0
      %3366 = vmatpush.bf16.xpose.msra.mxu0 0
      %3367 = vmatpush.bf16.xpose.msra.mxu0 %v3332
      %3368 = vmatpush.bf16.xpose.msra.mxu0 %v3329
      %3369 = vmatpush.bf16.xpose.msra.mxu0 %v3326
      %3370 = vmatmul.bf16.gmra.mxu0 %v3275
      %v3371 = vpop.f32.mrf.mxu0
      %v3372 = vadd.f32 %v3262, %v3371
      %v3373 = vpop.f32.mrf.mxu0
      %v3374 = vadd.f32 %v3267, %v3373
      %3375 = vdwg.mxu0
      %3376 = vst [vmem:[%s226] sm:$0xff] %v3344
      %3377 = vst [vmem:[%s226 + $0x8] sm:$0xff] %v3358
      %vm3378 = vcmask 277504
      %3379 = vst.msk [vmem:[%s226 + $0x10] sm:$0xff] %vm3378, %v3372
      %3380 = vst [vmem:[%s226 + $0x18] sm:$0xf] %v3346
      %3381 = vst [vmem:[%s226 + $0x20] sm:$0xf] %v3360
      %vm3382 = vcmask 273408
      %3383 = vst.msk [vmem:[%s226 + $0x28] sm:$0xf] %vm3382, %v3374
      %p3384 = scmp.lt.s32.totalorder %s16, 1
      %s3385 = scalar_select %p3384, %s16, 1
      %s3386 = smul.addr %s3385, 6
      %s3387 = smul.addr %s3386, 8
      %s3388 = scalar_lea.vmem %s5, %s3387
      // Predicated region
      $region41: #{unet_multibranch_classifier.1} parent=39 // pred_check
        %p3389 = pneg %p144
      $region42: #{unet_multibranch_classifier.1} parent=39 // pred_check_branch
        %3391 = sbr.rel (%p3389) target = $region44
      $region43: #{unet_multibranch_classifier.1} parent=39 // pred_region
        _
      $region44: #{unet_multibranch_classifier.1} parent=39 // pred_fallthru
        _
    $region40: #{unet_multibranch_classifier.1} parent=5 // pred_fallthru
      _
    %p3392 = scmp.le.s32.totalorder 2, %s11
    // Predicated region
    $region45: #{unet_multibranch_classifier.1} parent=5 // pred_check
      %p3393 = pneg %p3392
    $region46: #{unet_multibranch_classifier.1} parent=5 // pred_check_branch
      %3395 = sbr.rel (%p3393) target = $region48
    $region47: #{unet_multibranch_classifier.1} parent=5 // pred_region
      %s3396 = ssub.s32 %s11, 2
      // Predicated region
      $region49: #{unet_multibranch_classifier.1} parent=47 // pred_check
        %p3397 = pneg %p150
      $region50: #{unet_multibranch_classifier.1} parent=47 // pred_check_branch
        %3399 = sbr.rel (%p3397) target = $region52
      $region51: #{unet_multibranch_classifier.1} parent=47 // pred_region
        %p3400 = scmp.lt.s32.totalorder %s17, 1
        %s3401 = scalar_select %p3400, %s17, 1
        %s3402 = smul.addr %s3401, 6
        %s3403 = smul.addr %s3402, 8
        %s3404 = scalar_lea.vmem %s5, %s3403
      $region52: #{unet_multibranch_classifier.1} parent=47 // pred_fallthru
        _
    $region48: #{unet_multibranch_classifier.1} parent=5 // pred_fallthru
      _
  $region6: #{unet_multibranch_classifier.1} parent=0 // loop_footer
    %s15 = sadd.s32 1, %s11
  $region7: #{unet_multibranch_classifier.1} parent=0 // loop_footer_branch
    %10 = sbr.rel target = $region3
  $region8: #{unet_multibranch_classifier.1} parent=0 // loop_exit
    _

</llo_original>
